<compile_context>
chip_gen: v5e
topology: v5e:2x2
jax: 0.10.0
libtpu: 0.0.40
codegen_flags: <defaults>
</compile_context>

<pallas_src>
import functools

import jax
import jax.numpy as jnp
from jax.experimental import pallas as pl
from jax.experimental.pallas import tpu as pltpu  # noqa: F401  (see v7x TODO)


def _cross_attn_kernel(wemb_ref, pemb_ref, wq_ref, wkv_ref, wc_ref,
                       bqkv_ref, vec_ref, out_ref,
                       *, num_heads, head_dim, eps, mxu_dtype):
    H, hd = num_heads, head_dim
    N = H * hd
    B, Wseq, Dw = wemb_ref.shape
    _, Pseq, Dp = pemb_ref.shape

    # Residual / softmax / LayerNorm stay f32; only MXU operands get cast.
    x = wemb_ref[...].reshape(B * Wseq, Dw)            # (Mq, Dw) f32
    p = pemb_ref[...].reshape(B * Pseq, Dp)            # (Mk, Dp) f32
    bqkv = bqkv_ref[...]                               # (1, 3N) f32
    wc = wc_ref[...]                                   # (N, Dw) mxu_dtype

    # Flat, full-width projections (B*seq stacked into M).  The 1/sqrt(hd)
    # scale is already folded into wq/bq; K and V come from one fused matmul.
    q = jnp.dot(x.astype(mxu_dtype), wq_ref[...],
                preferred_element_type=jnp.float32) + bqkv[:, :N]      # (Mq, N)
    kv = jnp.dot(p.astype(mxu_dtype), wkv_ref[...],
                 preferred_element_type=jnp.float32) + bqkv[:, N:]     # (Mk, 2N)

    q3 = q.reshape(B, Wseq, N)
    k3 = kv[:, :N].reshape(B, Pseq, N)
    v3 = kv[:, N:].reshape(B, Pseq, N)

    # Per-head attention via static lane slices (trace-time unrolled, H small).
    # Head "concat" folded into the output projection: each head contributes
    #   sim_h @ wc[h*hd:(h+1)*hd, :]   to an f32 accumulator.
    acc = jnp.zeros((B * Wseq, Dw), jnp.float32)
    for h in range(H):
        sl = slice(h * hd, (h + 1) * hd)
        qh = q3[:, :, sl].astype(mxu_dtype)            # (B, Wseq, hd)
        kh = k3[:, :, sl].astype(mxu_dtype)            # (B, Pseq, hd)
        vh = v3[:, :, sl].astype(mxu_dtype)            # (B, Pseq, hd)

        # K-transpose folded into the contraction; scale already in q.
        s = jnp.einsum("bqd,bkd->bqk", qh, kh,
                       preferred_element_type=jnp.float32)   # (B, Wseq, Pseq)
        s = s - jnp.max(s, axis=-1, keepdims=True)
        e = jnp.exp(s)
        soft = e / jnp.sum(e, axis=-1, keepdims=True)  # exact divide (tiny)

        sim = jnp.einsum("bqk,bkd->bqd", soft.astype(mxu_dtype), vh,
                         preferred_element_type=jnp.float32)  # (B, Wseq, hd)
        acc = acc + jnp.dot(sim.reshape(B * Wseq, hd).astype(mxu_dtype),
                            wc[sl, :], preferred_element_type=jnp.float32)

    vecs = vec_ref[...]                                # (3, Dw): bc, gamma, beta
    bc, gamma, beta = vecs[0:1, :], vecs[1:2, :], vecs[2:3, :]

    # Residual + LayerNorm (biased variance, eps inside rsqrt -> matches torch).
    y = acc + bc + x
    mean = jnp.mean(y, axis=-1, keepdims=True)
    var = jnp.mean((y - mean) ** 2, axis=-1, keepdims=True)
    yn = (y - mean) * jax.lax.rsqrt(var + eps)
    out = yn * gamma + beta
    out_ref[...] = out.reshape(B, Wseq, Dw).astype(out_ref.dtype)


def cross_attention(wemb, pemb, params, *, num_heads,
                    mxu_dtype=jnp.bfloat16, eps=1e-5):
    """params: dict with wq,bq,wk,bk,wv,bv,wc,bc,gamma,beta.
    Weight matrices are stored (in_dim, out_dim); biases/gamma/beta as (1, dim)."""
    B, Wseq, Dw = wemb.shape
    _, Pseq, Dp = pemb.shape
    N = params["wq"].shape[1]
    H = num_heads
    hd = N // H
    scale = 1.0 / (hd ** 0.5)

    # --- wrapper-side packing / layout plumbing (free; outside the kernel) ---
    wq_s = (params["wq"] * scale).astype(mxu_dtype)                      # (Dw, N)
    wkv = jnp.concatenate([params["wk"], params["wv"]],
                          axis=1).astype(mxu_dtype)                      # (Dp, 2N)
    wc = params["wc"].astype(mxu_dtype)                                  # (N, Dw)
    bqkv = jnp.concatenate([params["bq"].reshape(1, N) * scale,
                            params["bk"].reshape(1, N),
                            params["bv"].reshape(1, N)], axis=1)         # (1, 3N)
    vec = jnp.stack([params["bc"].reshape(Dw),
                     params["gamma"].reshape(Dw),
                     params["beta"].reshape(Dw)], axis=0)                # (3, Dw)

    kernel = functools.partial(_cross_attn_kernel, num_heads=H, head_dim=hd,
                               eps=eps, mxu_dtype=mxu_dtype)

    # Single invocation, no grid: every operand is a whole-array VMEM block
    # (total working set is a few hundred KiB padded, far below VMEM on all of
    # v5e/v6e/v7x), so there is zero per-step grid overhead.
    # TODO(synk): for v7x, shard the batch across the 2 TensorCores
    # (grid=(B,) + pltpu.CORE_PARALLEL or pl.core_map) once profiled.
    return pl.pallas_call(
        kernel,
        out_shape=jax.ShapeDtypeStruct((B, Wseq, Dw), wemb.dtype),
    )(wemb, pemb, wq_s, wkv, wc, bqkv, vec)


def _reference(wemb, pemb, params, *, num_heads):
    B, Wseq, Dw = wemb.shape
    _, Pseq, _ = pemb.shape
    new_dim = params["wq"].shape[1]
    hd = new_dim // num_heads
    q = wemb @ params["wq"] + params["bq"]
    k = pemb @ params["wk"] + params["bk"]
    v = pemb @ params["wv"] + params["bv"]
    q = q.reshape(B, Wseq, num_heads, hd).transpose(0, 2, 1, 3)
    k = k.reshape(B, Pseq, num_heads, hd).transpose(0, 2, 1, 3)
    v = v.reshape(B, Pseq, num_heads, hd).transpose(0, 2, 1, 3)
    att = jnp.einsum("bhqd,bhkd->bhqk", q, k) / (hd ** 0.5)
    soft = jax.nn.softmax(att, axis=-1)
    sim = jnp.einsum("bhqk,bhkd->bhqd", soft, v)
    sim = sim.transpose(0, 2, 1, 3).reshape(B, Wseq, new_dim)
    proj = sim @ params["wc"] + params["bc"]
    y = proj + wemb
    mean = jnp.mean(y, axis=-1, keepdims=True)
    var = jnp.mean((y - mean) ** 2, axis=-1, keepdims=True)
    return (y - mean) * jax.lax.rsqrt(var + 1e-5) * params["gamma"] + params["beta"]


if __name__ == "__main__":
    # Module config (small, consistent with the __init__ asserts)
    Wemb_dim, Pemb_dim, new_dim, num_heads, voc_size = 32, 32, 32, 4, 100
    B, Wseq, Pseq = 2, 16, 16

    key = jax.random.PRNGKey(0)
    keys = jax.random.split(key, 12)

    def lin(kw, kb, d_in, d_out):
        w = jax.random.normal(kw, (d_in, d_out), jnp.float32) * 0.05
        b = jax.random.normal(kb, (1, d_out), jnp.float32) * 0.01
        return w, b

    wq, bq = lin(keys[0], keys[1], Wemb_dim, new_dim)
    wk, bk = lin(keys[2], keys[3], Pemb_dim, new_dim)
    wv, bv = lin(keys[4], keys[5], Pemb_dim, new_dim)
    wc, bc = lin(keys[6], keys[7], new_dim, Wemb_dim)
    gamma = jnp.ones((1, Wemb_dim), jnp.float32)
    beta = jnp.zeros((1, Wemb_dim), jnp.float32)
    params = dict(wq=wq, bq=bq, wk=wk, bk=bk, wv=wv, bv=bv,
                  wc=wc, bc=bc, gamma=gamma, beta=beta)

    wemb = jax.random.normal(keys[8], (B, Wseq, Wemb_dim), jnp.float32)
    pemb = jax.random.normal(keys[9], (B, Pseq, Pemb_dim), jnp.float32)

    out = cross_attention(wemb, pemb, params, num_heads=num_heads)
    out = jax.block_until_ready(out)

    ref = _reference(wemb, pemb, params, num_heads=num_heads)
    # Tolerance 2e-3: MXU operands are bf16 (f32 accumulation, f32 softmax/LN);
    # the softmax divide itself is exact.  Measured/estimated error is well
    # below this at these weight scales.
    assert jnp.allclose(out, ref, atol=2e-3, rtol=2e-3), "mismatch vs reference"

    print("KERNEL_OK")
</pallas_src>

<mosaic_0001>
module attributes {stable_mosaic.version = 11 : i64} {
  func.func @_cross_attn_kernel(%arg0: memref<2x16x32xf32, #tpu.memory_space<vmem>>, %arg1: memref<2x16x32xf32, #tpu.memory_space<vmem>>, %arg2: memref<32x32xbf16, #tpu.memory_space<vmem>>, %arg3: memref<32x64xbf16, #tpu.memory_space<vmem>>, %arg4: memref<32x32xbf16, #tpu.memory_space<vmem>>, %arg5: memref<1x96xf32, #tpu.memory_space<vmem>>, %arg6: memref<3x32xf32, #tpu.memory_space<vmem>>, %arg7: memref<2x16x32xf32, #tpu.memory_space<vmem>>) attributes {dimension_semantics = [], scalar_prefetch = 0 : i64, scratch_operands = 0 : i64, tpu.core_type = #tpu.core_type<tc>} {
    %c0 = arith.constant 0 : index
    %c0_0 = arith.constant 0 : index
    %c0_1 = arith.constant 0 : index
    %0 = vector.load %arg0[%c0, %c0_0, %c0_1] : memref<2x16x32xf32, #tpu.memory_space<vmem>>, vector<2x16x32xf32>
    %1 = vector.shape_cast %0 : vector<2x16x32xf32> to vector<32x32xf32>
    %c0_2 = arith.constant 0 : index
    %c0_3 = arith.constant 0 : index
    %c0_4 = arith.constant 0 : index
    %2 = vector.load %arg1[%c0_2, %c0_3, %c0_4] : memref<2x16x32xf32, #tpu.memory_space<vmem>>, vector<2x16x32xf32>
    %3 = vector.shape_cast %2 : vector<2x16x32xf32> to vector<32x32xf32>
    %c0_5 = arith.constant 0 : index
    %c0_6 = arith.constant 0 : index
    %4 = vector.load %arg5[%c0_5, %c0_6] : memref<1x96xf32, #tpu.memory_space<vmem>>, vector<1x96xf32>
    %c0_7 = arith.constant 0 : index
    %c0_8 = arith.constant 0 : index
    %5 = vector.load %arg4[%c0_7, %c0_8] : memref<32x32xbf16, #tpu.memory_space<vmem>>, vector<32x32xbf16>
    %6 = arith.truncf %1 : vector<32x32xf32> to vector<32x32xbf16>
    %c0_9 = arith.constant 0 : index
    %c0_10 = arith.constant 0 : index
    %7 = vector.load %arg2[%c0_9, %c0_10] : memref<32x32xbf16, #tpu.memory_space<vmem>>, vector<32x32xbf16>
    %cst = arith.constant dense<0.000000e+00> : vector<32x32xf32>
    %8 = tpu.matmul %6, %7, %cst {dimension_numbers = #tpu.dot_dimension_numbers<[1], [0], [0], [1], [0, 0, 1, 1], [], []>} : vector<32x32xbf16>, vector<32x32xbf16>, vector<32x32xf32> -> vector<32x32xf32>
    %9 = vector.extract_strided_slice %4 {offsets = [0, 0], sizes = [1, 32], strides = [1, 1]} : vector<1x96xf32> to vector<1x32xf32>
    %10 = vector.broadcast %9 : vector<1x32xf32> to vector<32x32xf32>
    %11 = arith.addf %8, %10 : vector<32x32xf32>
    %12 = arith.truncf %3 : vector<32x32xf32> to vector<32x32xbf16>
    %c0_11 = arith.constant 0 : index
    %c0_12 = arith.constant 0 : index
    %13 = vector.load %arg3[%c0_11, %c0_12] : memref<32x64xbf16, #tpu.memory_space<vmem>>, vector<32x64xbf16>
    %cst_13 = arith.constant dense<0.000000e+00> : vector<32x64xf32>
    %14 = tpu.matmul %12, %13, %cst_13 {dimension_numbers = #tpu.dot_dimension_numbers<[1], [0], [0], [1], [0, 0, 1, 1], [], []>} : vector<32x32xbf16>, vector<32x64xbf16>, vector<32x64xf32> -> vector<32x64xf32>
    %15 = vector.extract_strided_slice %4 {offsets = [0, 32], sizes = [1, 64], strides = [1, 1]} : vector<1x96xf32> to vector<1x64xf32>
    %16 = vector.broadcast %15 : vector<1x64xf32> to vector<32x64xf32>
    %17 = arith.addf %14, %16 : vector<32x64xf32>
    %18 = vector.shape_cast %11 : vector<32x32xf32> to vector<2x16x32xf32>
    %19 = vector.extract_strided_slice %17 {offsets = [0, 0], sizes = [32, 32], strides = [1, 1]} : vector<32x64xf32> to vector<32x32xf32>
    %20 = vector.shape_cast %19 : vector<32x32xf32> to vector<2x16x32xf32>
    %21 = vector.extract_strided_slice %17 {offsets = [0, 32], sizes = [32, 32], strides = [1, 1]} : vector<32x64xf32> to vector<32x32xf32>
    %22 = vector.shape_cast %21 : vector<32x32xf32> to vector<2x16x32xf32>
    %cst_14 = arith.constant 0.000000e+00 : f32
    %23 = vector.broadcast %cst_14 : f32 to vector<32x32xf32>
    %24 = vector.extract_strided_slice %18 {offsets = [0, 0, 0], sizes = [2, 16, 8], strides = [1, 1, 1]} : vector<2x16x32xf32> to vector<2x16x8xf32>
    %25 = arith.truncf %24 : vector<2x16x8xf32> to vector<2x16x8xbf16>
    %26 = vector.extract_strided_slice %20 {offsets = [0, 0, 0], sizes = [2, 16, 8], strides = [1, 1, 1]} : vector<2x16x32xf32> to vector<2x16x8xf32>
    %27 = arith.truncf %26 : vector<2x16x8xf32> to vector<2x16x8xbf16>
    %28 = vector.extract_strided_slice %22 {offsets = [0, 0, 0], sizes = [2, 16, 8], strides = [1, 1, 1]} : vector<2x16x32xf32> to vector<2x16x8xf32>
    %29 = arith.truncf %28 : vector<2x16x8xf32> to vector<2x16x8xbf16>
    "tpu.trace_start"() <{level = 10 : i32, message = "bqd,bkd->bqk"}> : () -> ()
    %cst_15 = arith.constant dense<0.000000e+00> : vector<2x16x16xf32>
    %30 = tpu.matmul %25, %27, %cst_15 {dimension_numbers = #tpu.dot_dimension_numbers<[2], [2], [1], [1], [0, 0, 0, 1, 1, 1], [0], [0]>} : vector<2x16x8xbf16>, vector<2x16x8xbf16>, vector<2x16x16xf32> -> vector<2x16x16xf32>
    "tpu.trace_stop"() : () -> ()
    %cst_16 = arith.constant dense<0xFF800000> : vector<2x16xf32>
    %31 = vector.multi_reduction <maximumf>, %30, %cst_16 [2] : vector<2x16x16xf32> to vector<2x16xf32>
    %32 = vector.shape_cast %31 : vector<2x16xf32> to vector<2x16x1xf32>
    %33 = vector.broadcast %32 : vector<2x16x1xf32> to vector<2x16x16xf32>
    %34 = arith.subf %30, %33 : vector<2x16x16xf32>
    %35 = math.exp %34 : vector<2x16x16xf32>
    %cst_17 = arith.constant dense<0.000000e+00> : vector<2x16xf32>
    %36 = vector.multi_reduction <add>, %35, %cst_17 [2] : vector<2x16x16xf32> to vector<2x16xf32>
    %37 = vector.shape_cast %36 : vector<2x16xf32> to vector<2x16x1xf32>
    %38 = vector.broadcast %37 : vector<2x16x1xf32> to vector<2x16x16xf32>
    %39 = arith.divf %35, %38 : vector<2x16x16xf32>
    %40 = arith.truncf %39 : vector<2x16x16xf32> to vector<2x16x16xbf16>
    "tpu.trace_start"() <{level = 10 : i32, message = "bqk,bkd->bqd"}> : () -> ()
    %cst_18 = arith.constant dense<0.000000e+00> : vector<2x16x8xf32>
    %41 = tpu.matmul %40, %29, %cst_18 {dimension_numbers = #tpu.dot_dimension_numbers<[2], [1], [1], [2], [0, 0, 0, 1, 1, 2], [0], [0]>} : vector<2x16x16xbf16>, vector<2x16x8xbf16>, vector<2x16x8xf32> -> vector<2x16x8xf32>
    "tpu.trace_stop"() : () -> ()
    %42 = vector.shape_cast %41 : vector<2x16x8xf32> to vector<32x8xf32>
    %43 = arith.truncf %42 : vector<32x8xf32> to vector<32x8xbf16>
    %44 = vector.extract_strided_slice %5 {offsets = [0, 0], sizes = [8, 32], strides = [1, 1]} : vector<32x32xbf16> to vector<8x32xbf16>
    %cst_19 = arith.constant dense<0.000000e+00> : vector<32x32xf32>
    %45 = tpu.matmul %43, %44, %cst_19 {dimension_numbers = #tpu.dot_dimension_numbers<[1], [0], [0], [1], [0, 0, 1, 1], [], []>} : vector<32x8xbf16>, vector<8x32xbf16>, vector<32x32xf32> -> vector<32x32xf32>
    %46 = arith.addf %23, %45 : vector<32x32xf32>
    %47 = vector.extract_strided_slice %18 {offsets = [0, 0, 8], sizes = [2, 16, 8], strides = [1, 1, 1]} : vector<2x16x32xf32> to vector<2x16x8xf32>
    %48 = arith.truncf %47 : vector<2x16x8xf32> to vector<2x16x8xbf16>
    %49 = vector.extract_strided_slice %20 {offsets = [0, 0, 8], sizes = [2, 16, 8], strides = [1, 1, 1]} : vector<2x16x32xf32> to vector<2x16x8xf32>
    %50 = arith.truncf %49 : vector<2x16x8xf32> to vector<2x16x8xbf16>
    %51 = vector.extract_strided_slice %22 {offsets = [0, 0, 8], sizes = [2, 16, 8], strides = [1, 1, 1]} : vector<2x16x32xf32> to vector<2x16x8xf32>
    %52 = arith.truncf %51 : vector<2x16x8xf32> to vector<2x16x8xbf16>
    "tpu.trace_start"() <{level = 10 : i32, message = "bqd,bkd->bqk"}> : () -> ()
    %cst_20 = arith.constant dense<0.000000e+00> : vector<2x16x16xf32>
    %53 = tpu.matmul %48, %50, %cst_20 {dimension_numbers = #tpu.dot_dimension_numbers<[2], [2], [1], [1], [0, 0, 0, 1, 1, 1], [0], [0]>} : vector<2x16x8xbf16>, vector<2x16x8xbf16>, vector<2x16x16xf32> -> vector<2x16x16xf32>
    "tpu.trace_stop"() : () -> ()
    %cst_21 = arith.constant dense<0xFF800000> : vector<2x16xf32>
    %54 = vector.multi_reduction <maximumf>, %53, %cst_21 [2] : vector<2x16x16xf32> to vector<2x16xf32>
    %55 = vector.shape_cast %54 : vector<2x16xf32> to vector<2x16x1xf32>
    %56 = vector.broadcast %55 : vector<2x16x1xf32> to vector<2x16x16xf32>
    %57 = arith.subf %53, %56 : vector<2x16x16xf32>
    %58 = math.exp %57 : vector<2x16x16xf32>
    %cst_22 = arith.constant dense<0.000000e+00> : vector<2x16xf32>
    %59 = vector.multi_reduction <add>, %58, %cst_22 [2] : vector<2x16x16xf32> to vector<2x16xf32>
    %60 = vector.shape_cast %59 : vector<2x16xf32> to vector<2x16x1xf32>
    %61 = vector.broadcast %60 : vector<2x16x1xf32> to vector<2x16x16xf32>
    %62 = arith.divf %58, %61 : vector<2x16x16xf32>
    %63 = arith.truncf %62 : vector<2x16x16xf32> to vector<2x16x16xbf16>
    "tpu.trace_start"() <{level = 10 : i32, message = "bqk,bkd->bqd"}> : () -> ()
    %cst_23 = arith.constant dense<0.000000e+00> : vector<2x16x8xf32>
    %64 = tpu.matmul %63, %52, %cst_23 {dimension_numbers = #tpu.dot_dimension_numbers<[2], [1], [1], [2], [0, 0, 0, 1, 1, 2], [0], [0]>} : vector<2x16x16xbf16>, vector<2x16x8xbf16>, vector<2x16x8xf32> -> vector<2x16x8xf32>
    "tpu.trace_stop"() : () -> ()
    %65 = vector.shape_cast %64 : vector<2x16x8xf32> to vector<32x8xf32>
    %66 = arith.truncf %65 : vector<32x8xf32> to vector<32x8xbf16>
    %67 = vector.extract_strided_slice %5 {offsets = [8, 0], sizes = [8, 32], strides = [1, 1]} : vector<32x32xbf16> to vector<8x32xbf16>
    %cst_24 = arith.constant dense<0.000000e+00> : vector<32x32xf32>
    %68 = tpu.matmul %66, %67, %cst_24 {dimension_numbers = #tpu.dot_dimension_numbers<[1], [0], [0], [1], [0, 0, 1, 1], [], []>} : vector<32x8xbf16>, vector<8x32xbf16>, vector<32x32xf32> -> vector<32x32xf32>
    %69 = arith.addf %46, %68 : vector<32x32xf32>
    %70 = vector.extract_strided_slice %18 {offsets = [0, 0, 16], sizes = [2, 16, 8], strides = [1, 1, 1]} : vector<2x16x32xf32> to vector<2x16x8xf32>
    %71 = arith.truncf %70 : vector<2x16x8xf32> to vector<2x16x8xbf16>
    %72 = vector.extract_strided_slice %20 {offsets = [0, 0, 16], sizes = [2, 16, 8], strides = [1, 1, 1]} : vector<2x16x32xf32> to vector<2x16x8xf32>
    %73 = arith.truncf %72 : vector<2x16x8xf32> to vector<2x16x8xbf16>
    %74 = vector.extract_strided_slice %22 {offsets = [0, 0, 16], sizes = [2, 16, 8], strides = [1, 1, 1]} : vector<2x16x32xf32> to vector<2x16x8xf32>
    %75 = arith.truncf %74 : vector<2x16x8xf32> to vector<2x16x8xbf16>
    "tpu.trace_start"() <{level = 10 : i32, message = "bqd,bkd->bqk"}> : () -> ()
    %cst_25 = arith.constant dense<0.000000e+00> : vector<2x16x16xf32>
    %76 = tpu.matmul %71, %73, %cst_25 {dimension_numbers = #tpu.dot_dimension_numbers<[2], [2], [1], [1], [0, 0, 0, 1, 1, 1], [0], [0]>} : vector<2x16x8xbf16>, vector<2x16x8xbf16>, vector<2x16x16xf32> -> vector<2x16x16xf32>
    "tpu.trace_stop"() : () -> ()
    %cst_26 = arith.constant dense<0xFF800000> : vector<2x16xf32>
    %77 = vector.multi_reduction <maximumf>, %76, %cst_26 [2] : vector<2x16x16xf32> to vector<2x16xf32>
    %78 = vector.shape_cast %77 : vector<2x16xf32> to vector<2x16x1xf32>
    %79 = vector.broadcast %78 : vector<2x16x1xf32> to vector<2x16x16xf32>
    %80 = arith.subf %76, %79 : vector<2x16x16xf32>
    %81 = math.exp %80 : vector<2x16x16xf32>
    %cst_27 = arith.constant dense<0.000000e+00> : vector<2x16xf32>
    %82 = vector.multi_reduction <add>, %81, %cst_27 [2] : vector<2x16x16xf32> to vector<2x16xf32>
    %83 = vector.shape_cast %82 : vector<2x16xf32> to vector<2x16x1xf32>
    %84 = vector.broadcast %83 : vector<2x16x1xf32> to vector<2x16x16xf32>
    %85 = arith.divf %81, %84 : vector<2x16x16xf32>
    %86 = arith.truncf %85 : vector<2x16x16xf32> to vector<2x16x16xbf16>
    "tpu.trace_start"() <{level = 10 : i32, message = "bqk,bkd->bqd"}> : () -> ()
    %cst_28 = arith.constant dense<0.000000e+00> : vector<2x16x8xf32>
    %87 = tpu.matmul %86, %75, %cst_28 {dimension_numbers = #tpu.dot_dimension_numbers<[2], [1], [1], [2], [0, 0, 0, 1, 1, 2], [0], [0]>} : vector<2x16x16xbf16>, vector<2x16x8xbf16>, vector<2x16x8xf32> -> vector<2x16x8xf32>
    "tpu.trace_stop"() : () -> ()
    %88 = vector.shape_cast %87 : vector<2x16x8xf32> to vector<32x8xf32>
    %89 = arith.truncf %88 : vector<32x8xf32> to vector<32x8xbf16>
    %90 = vector.extract_strided_slice %5 {offsets = [16, 0], sizes = [8, 32], strides = [1, 1]} : vector<32x32xbf16> to vector<8x32xbf16>
    %cst_29 = arith.constant dense<0.000000e+00> : vector<32x32xf32>
    %91 = tpu.matmul %89, %90, %cst_29 {dimension_numbers = #tpu.dot_dimension_numbers<[1], [0], [0], [1], [0, 0, 1, 1], [], []>} : vector<32x8xbf16>, vector<8x32xbf16>, vector<32x32xf32> -> vector<32x32xf32>
    %92 = arith.addf %69, %91 : vector<32x32xf32>
    %93 = vector.extract_strided_slice %18 {offsets = [0, 0, 24], sizes = [2, 16, 8], strides = [1, 1, 1]} : vector<2x16x32xf32> to vector<2x16x8xf32>
    %94 = arith.truncf %93 : vector<2x16x8xf32> to vector<2x16x8xbf16>
    %95 = vector.extract_strided_slice %20 {offsets = [0, 0, 24], sizes = [2, 16, 8], strides = [1, 1, 1]} : vector<2x16x32xf32> to vector<2x16x8xf32>
    %96 = arith.truncf %95 : vector<2x16x8xf32> to vector<2x16x8xbf16>
    %97 = vector.extract_strided_slice %22 {offsets = [0, 0, 24], sizes = [2, 16, 8], strides = [1, 1, 1]} : vector<2x16x32xf32> to vector<2x16x8xf32>
    %98 = arith.truncf %97 : vector<2x16x8xf32> to vector<2x16x8xbf16>
    "tpu.trace_start"() <{level = 10 : i32, message = "bqd,bkd->bqk"}> : () -> ()
    %cst_30 = arith.constant dense<0.000000e+00> : vector<2x16x16xf32>
    %99 = tpu.matmul %94, %96, %cst_30 {dimension_numbers = #tpu.dot_dimension_numbers<[2], [2], [1], [1], [0, 0, 0, 1, 1, 1], [0], [0]>} : vector<2x16x8xbf16>, vector<2x16x8xbf16>, vector<2x16x16xf32> -> vector<2x16x16xf32>
    "tpu.trace_stop"() : () -> ()
    %cst_31 = arith.constant dense<0xFF800000> : vector<2x16xf32>
    %100 = vector.multi_reduction <maximumf>, %99, %cst_31 [2] : vector<2x16x16xf32> to vector<2x16xf32>
    %101 = vector.shape_cast %100 : vector<2x16xf32> to vector<2x16x1xf32>
    %102 = vector.broadcast %101 : vector<2x16x1xf32> to vector<2x16x16xf32>
    %103 = arith.subf %99, %102 : vector<2x16x16xf32>
    %104 = math.exp %103 : vector<2x16x16xf32>
    %cst_32 = arith.constant dense<0.000000e+00> : vector<2x16xf32>
    %105 = vector.multi_reduction <add>, %104, %cst_32 [2] : vector<2x16x16xf32> to vector<2x16xf32>
    %106 = vector.shape_cast %105 : vector<2x16xf32> to vector<2x16x1xf32>
    %107 = vector.broadcast %106 : vector<2x16x1xf32> to vector<2x16x16xf32>
    %108 = arith.divf %104, %107 : vector<2x16x16xf32>
    %109 = arith.truncf %108 : vector<2x16x16xf32> to vector<2x16x16xbf16>
    "tpu.trace_start"() <{level = 10 : i32, message = "bqk,bkd->bqd"}> : () -> ()
    %cst_33 = arith.constant dense<0.000000e+00> : vector<2x16x8xf32>
    %110 = tpu.matmul %109, %98, %cst_33 {dimension_numbers = #tpu.dot_dimension_numbers<[2], [1], [1], [2], [0, 0, 0, 1, 1, 2], [0], [0]>} : vector<2x16x16xbf16>, vector<2x16x8xbf16>, vector<2x16x8xf32> -> vector<2x16x8xf32>
    "tpu.trace_stop"() : () -> ()
    %111 = vector.shape_cast %110 : vector<2x16x8xf32> to vector<32x8xf32>
    %112 = arith.truncf %111 : vector<32x8xf32> to vector<32x8xbf16>
    %113 = vector.extract_strided_slice %5 {offsets = [24, 0], sizes = [8, 32], strides = [1, 1]} : vector<32x32xbf16> to vector<8x32xbf16>
    %cst_34 = arith.constant dense<0.000000e+00> : vector<32x32xf32>
    %114 = tpu.matmul %112, %113, %cst_34 {dimension_numbers = #tpu.dot_dimension_numbers<[1], [0], [0], [1], [0, 0, 1, 1], [], []>} : vector<32x8xbf16>, vector<8x32xbf16>, vector<32x32xf32> -> vector<32x32xf32>
    %115 = arith.addf %92, %114 : vector<32x32xf32>
    %c0_35 = arith.constant 0 : index
    %c0_36 = arith.constant 0 : index
    %116 = vector.load %arg6[%c0_35, %c0_36] : memref<3x32xf32, #tpu.memory_space<vmem>>, vector<3x32xf32>
    %117 = vector.extract_strided_slice %116 {offsets = [0, 0], sizes = [1, 32], strides = [1, 1]} : vector<3x32xf32> to vector<1x32xf32>
    %118 = vector.extract_strided_slice %116 {offsets = [1, 0], sizes = [1, 32], strides = [1, 1]} : vector<3x32xf32> to vector<1x32xf32>
    %119 = vector.extract_strided_slice %116 {offsets = [2, 0], sizes = [1, 32], strides = [1, 1]} : vector<3x32xf32> to vector<1x32xf32>
    %120 = vector.broadcast %117 : vector<1x32xf32> to vector<32x32xf32>
    %121 = arith.addf %115, %120 : vector<32x32xf32>
    %122 = arith.addf %121, %1 : vector<32x32xf32>
    %cst_37 = arith.constant dense<0.000000e+00> : vector<32xf32>
    %123 = vector.multi_reduction <add>, %122, %cst_37 [1] : vector<32x32xf32> to vector<32xf32>
    %124 = vector.shape_cast %123 : vector<32xf32> to vector<32x1xf32>
    %cst_38 = arith.constant 3.200000e+01 : f32
    %125 = vector.broadcast %cst_38 : f32 to vector<32x1xf32>
    %126 = arith.divf %124, %125 : vector<32x1xf32>
    %127 = vector.broadcast %126 : vector<32x1xf32> to vector<32x32xf32>
    %128 = arith.subf %122, %127 : vector<32x32xf32>
    %129 = arith.mulf %128, %128 : vector<32x32xf32>
    %cst_39 = arith.constant dense<0.000000e+00> : vector<32xf32>
    %130 = vector.multi_reduction <add>, %129, %cst_39 [1] : vector<32x32xf32> to vector<32xf32>
    %131 = vector.shape_cast %130 : vector<32xf32> to vector<32x1xf32>
    %cst_40 = arith.constant 3.200000e+01 : f32
    %132 = vector.broadcast %cst_40 : f32 to vector<32x1xf32>
    %133 = arith.divf %131, %132 : vector<32x1xf32>
    %134 = vector.broadcast %126 : vector<32x1xf32> to vector<32x32xf32>
    %135 = arith.subf %122, %134 : vector<32x32xf32>
    %cst_41 = arith.constant 9.99999974E-6 : f32
    %136 = vector.broadcast %cst_41 : f32 to vector<32x1xf32>
    %137 = arith.addf %133, %136 : vector<32x1xf32>
    %138 = math.rsqrt %137 : vector<32x1xf32>
    %139 = vector.broadcast %138 : vector<32x1xf32> to vector<32x32xf32>
    %140 = arith.mulf %135, %139 : vector<32x32xf32>
    %141 = vector.broadcast %118 : vector<1x32xf32> to vector<32x32xf32>
    %142 = arith.mulf %140, %141 : vector<32x32xf32>
    %143 = vector.broadcast %119 : vector<1x32xf32> to vector<32x32xf32>
    %144 = arith.addf %142, %143 : vector<32x32xf32>
    %145 = vector.shape_cast %144 : vector<32x32xf32> to vector<2x16x32xf32>
    %c0_42 = arith.constant 0 : index
    %c0_43 = arith.constant 0 : index
    %c0_44 = arith.constant 0 : index
    %146 = vector.load %arg7[%c0_42, %c0_43, %c0_44] : memref<2x16x32xf32, #tpu.memory_space<vmem>>, vector<2x16x32xf32>
    tpu.vector_store %arg7[%c0_42, %c0_43, %c0_44], %145 {strides = array<i32>} : memref<2x16x32xf32, #tpu.memory_space<vmem>>, vector<2x16x32xf32>,
    return
  }
}

</mosaic_0001>

<llo_original>
// kernel: tpu_custom_call.1
$region0: #{tpu_custom_call.1}
  #allocation0 [shape = 'u32[]', space=smem, size = 0x4, offset = 0x4, fixed_abs, tag = 'smem constant byte address 0x4 - core index']
  #allocation1 [shape = 'u32[72,128]{1,0:T(1,128)}', space=vmem, size = 0x9000, scoped, tag = 'internal scratch']
  %s0 = inlined_call_operand.hbm [shape: f32[2,16,32], index: 0, kind: input, shape index: {}]
  %s1 = inlined_call_operand.hbm [shape: f32[2,16,32], index: 1, kind: input, shape index: {}]
  %s2 = inlined_call_operand.hbm [shape: bf16[32,32], index: 2, kind: input, shape index: {}]
  %s3 = inlined_call_operand.hbm [shape: bf16[32,64], index: 3, kind: input, shape index: {}]
  %s4 = inlined_call_operand.hbm [shape: bf16[32,32], index: 4, kind: input, shape index: {}]
  %s5 = inlined_call_operand.vmem [shape: f32[1,96], index: 5, kind: input, shape index: {}]
  %s6 = inlined_call_operand.vmem [shape: f32[3,32], index: 6, kind: input, shape index: {}]
  %s7 = inlined_call_operand.hbm [shape: f32[2,16,32], index: 7, kind: output, shape index: {}]
  %s8 = sld [smem:[#allocation0]]
  $region58: #{tpu_custom_call.1} parent=0
    _
  %s10 = ssub.s32 1, %s8
  %s11 = scalar_select 0, %s10, %s8
  $region1: #{tpu_custom_call.1} parent=0
    #allocation2 [shape = 'u8[16384]{0}', space=vmem, size = 0x4000, scoped, tag = 'input window, operand 0, single buffered']
    #allocation3 [shape = 's32[1]{0}', space=sflag, size = 0x4, scoped, tag = 'scoped memory for tpu_custom_call.1']
    #allocation4 [shape = 's32[1]{0}', space=sflag, size = 0x4, scoped, tag = 'scoped memory for tpu_custom_call.1']
    #allocation5 [shape = 'u8[16384]{0}', space=vmem, size = 0x4000, scoped, tag = 'input window, operand 1, single buffered']
    #allocation6 [shape = 's32[1]{0}', space=sflag, size = 0x4, scoped, tag = 'scoped memory for tpu_custom_call.1']
    #allocation7 [shape = 'u8[8192]{0}', space=vmem, size = 0x2000, scoped, tag = 'input window, operand 2, single buffered']
    #allocation8 [shape = 'u8[8192]{0}', space=vmem, size = 0x2000, scoped, tag = 'input window, operand 3, single buffered']
    #allocation9 [shape = 's32[1]{0}', space=sflag, size = 0x4, scoped, tag = 'scoped memory for tpu_custom_call.1']
    #allocation10 [shape = 'u8[8192]{0}', space=vmem, size = 0x2000, scoped, tag = 'input window, operand 4, single buffered']
    #allocation11 [shape = 'u8[16384]{0}', space=vmem, size = 0x4000, scoped, tag = 'output window, operand 0, single buffered']
    %12 = vsyncpa [#allocation3], 0
    %13 = vsyncpa [#allocation6], 0
    %14 = vsyncpa [#allocation9], 0
    %15 = vsyncpa [#allocation4], 0
    // Predicated region
    $region2: #{tpu_custom_call.1} parent=1 // pred_check
      _
    $region3: #{tpu_custom_call.1} parent=1 // pred_check_branch
      %17 = sbr.rel (0) target = $region5
    $region4: #{tpu_custom_call.1} parent=1 // pred_region
      %19 = vsyncadd [#allocation3], 0
      %s20 = sshll.u32 %s0, 4
      %s21 = int_to_ptr.hbm [resolvable:$true] %s20
      %s22 = sshll.u32 [#allocation2], 4
      %s23 = int_to_ptr.vmem [resolvable:$true] %s22
      %28 = dma.hbm_to_vmem [thread:$0]  %s21, 512, %s23, [#allocation3], 128, 128, 8
    $region5: #{tpu_custom_call.1} parent=1 // pred_fallthru
      _
    // Predicated region
    $region6: #{tpu_custom_call.1} parent=1 // pred_check
      _
    $region7: #{tpu_custom_call.1} parent=1 // pred_check_branch
      %30 = sbr.rel (0) target = $region9
    $region8: #{tpu_custom_call.1} parent=1 // pred_region
      %32 = vsyncadd [#allocation6], 0
      %s33 = sshll.u32 %s1, 4
      %s34 = int_to_ptr.hbm [resolvable:$true] %s33
      %s35 = sshll.u32 [#allocation5], 4
      %s36 = int_to_ptr.vmem [resolvable:$true] %s35
      %41 = dma.hbm_to_vmem [thread:$0]  %s34, 512, %s36, [#allocation6], 128, 128, 8
    $region9: #{tpu_custom_call.1} parent=1 // pred_fallthru
      _
    // Predicated region
    $region10: #{tpu_custom_call.1} parent=1 // pred_check
      _
    $region11: #{tpu_custom_call.1} parent=1 // pred_check_branch
      %43 = sbr.rel (0) target = $region13
    $region12: #{tpu_custom_call.1} parent=1 // pred_region
      %45 = vsyncadd [#allocation6], 0
      %s46 = sshll.u32 %s2, 4
      %s47 = int_to_ptr.hbm [resolvable:$true] %s46
      %s48 = sshll.u32 [#allocation7], 4
      %s49 = int_to_ptr.vmem [resolvable:$true] %s48
      %54 = dma.hbm_to_vmem [thread:$0]  %s47, 256, %s49, [#allocation6], 64, 64, 4
    $region13: #{tpu_custom_call.1} parent=1 // pred_fallthru
      _
    // Predicated region
    $region14: #{tpu_custom_call.1} parent=1 // pred_check
      _
    $region15: #{tpu_custom_call.1} parent=1 // pred_check_branch
      %56 = sbr.rel (0) target = $region17
    $region16: #{tpu_custom_call.1} parent=1 // pred_region
      %58 = vsyncadd [#allocation9], 0
      %s59 = sshll.u32 %s3, 4
      %s60 = int_to_ptr.hbm [resolvable:$true] %s59
      %s61 = sshll.u32 [#allocation8], 4
      %s62 = int_to_ptr.vmem [resolvable:$true] %s61
      %67 = dma.hbm_to_vmem [thread:$0]  %s60, 256, %s62, [#allocation9], 64, 64, 4
    $region17: #{tpu_custom_call.1} parent=1 // pred_fallthru
      _
    // Predicated region
    $region18: #{tpu_custom_call.1} parent=1 // pred_check
      _
    $region19: #{tpu_custom_call.1} parent=1 // pred_check_branch
      %69 = sbr.rel (0) target = $region21
    $region20: #{tpu_custom_call.1} parent=1 // pred_region
      %71 = vsyncadd [#allocation9], 0
      %s72 = sshll.u32 %s4, 4
      %s73 = int_to_ptr.hbm [resolvable:$true] %s72
      %s74 = sshll.u32 [#allocation10], 4
      %s75 = int_to_ptr.vmem [resolvable:$true] %s74
      %80 = dma.hbm_to_vmem [thread:$0]  %s73, 256, %s75, [#allocation9], 64, 64, 4
    $region21: #{tpu_custom_call.1} parent=1 // pred_fallthru
      _
    // Predicated region
    $region22: #{tpu_custom_call.1} parent=1 // pred_check
      _
    $region23: #{tpu_custom_call.1} parent=1 // pred_check_branch
      %82 = sbr.rel (0) target = $region25
    $region24: #{tpu_custom_call.1} parent=1 // pred_region
      _
    $region25: #{tpu_custom_call.1} parent=1 // pred_fallthru
      _
    // Predicated region
    $region26: #{tpu_custom_call.1} parent=1 // pred_check
      _
    $region27: #{tpu_custom_call.1} parent=1 // pred_check_branch
      %84 = sbr.rel (0) target = $region29
    $region28: #{tpu_custom_call.1} parent=1 // pred_region
      _
    $region29: #{tpu_custom_call.1} parent=1 // pred_fallthru
      _
    // Predicated region
    $region30: #{tpu_custom_call.1} parent=1 // pred_check
      _
    $region31: #{tpu_custom_call.1} parent=1 // pred_check_branch
      %86 = sbr.rel (0) target = $region33
    $region32: #{tpu_custom_call.1} parent=1 // pred_region
      %88 = dma.done [#allocation3], 512
    $region33: #{tpu_custom_call.1} parent=1 // pred_fallthru
      _
    // Predicated region
    $region34: #{tpu_custom_call.1} parent=1 // pred_check
      _
    $region35: #{tpu_custom_call.1} parent=1 // pred_check_branch
      %90 = sbr.rel (0) target = $region37
    $region36: #{tpu_custom_call.1} parent=1 // pred_region
      %92 = dma.done [#allocation6], 512
    $region37: #{tpu_custom_call.1} parent=1 // pred_fallthru
      _
    // Predicated region
    $region38: #{tpu_custom_call.1} parent=1 // pred_check
      _
    $region39: #{tpu_custom_call.1} parent=1 // pred_check_branch
      %94 = sbr.rel (0) target = $region41
    $region40: #{tpu_custom_call.1} parent=1 // pred_region
      %96 = dma.done [#allocation6], 256
    $region41: #{tpu_custom_call.1} parent=1 // pred_fallthru
      _
    // Predicated region
    $region42: #{tpu_custom_call.1} parent=1 // pred_check
      _
    $region43: #{tpu_custom_call.1} parent=1 // pred_check_branch
      %98 = sbr.rel (0) target = $region45
    $region44: #{tpu_custom_call.1} parent=1 // pred_region
      %100 = dma.done [#allocation9], 256
    $region45: #{tpu_custom_call.1} parent=1 // pred_fallthru
      _
    // Predicated region
    $region46: #{tpu_custom_call.1} parent=1 // pred_check
      _
    $region47: #{tpu_custom_call.1} parent=1 // pred_check_branch
      %102 = sbr.rel (0) target = $region49
    $region48: #{tpu_custom_call.1} parent=1 // pred_region
      %104 = dma.done [#allocation9], 256
    $region49: #{tpu_custom_call.1} parent=1 // pred_fallthru
      _
    %v106 = vld [vmem:[#allocation2] sm:$0xff]
    %v107 = vld [vmem:[#allocation2 + $0x8] sm:$0xff]
    %v108 = vld [vmem:[#allocation2 + $0x10] sm:$0xff]
    %v109 = vld [vmem:[#allocation2 + $0x18] sm:$0xff]
    %v110 = vld [vmem:[#allocation5] sm:$0xff]
    %v111 = vld [vmem:[#allocation5 + $0x8] sm:$0xff]
    %v112 = vld [vmem:[#allocation5 + $0x10] sm:$0xff]
    %v113 = vld [vmem:[#allocation5 + $0x18] sm:$0xff]
    %v114 = vld [vmem:[%s5] sm:$0x1]
    %v115 = vld [vmem:[#allocation10] sm:$0xf]
    %v116 = vld [vmem:[#allocation10 + $0x4] sm:$0xf]
    %v117 = vld [vmem:[#allocation10 + $0x8] sm:$0xf]
    %v118 = vld [vmem:[#allocation10 + $0xc] sm:$0xf]
    %v119 = vpack.c.bf16 %v107, %v106
    %v120 = vpack.c.bf16 %v109, %v108
    %v121 = vld [vmem:[#allocation7] sm:$0xf]
    %v122 = vld [vmem:[#allocation7 + $0x4] sm:$0xf]
    %v123 = vld [vmem:[#allocation7 + $0x8] sm:$0xf]
    %v124 = vld [vmem:[#allocation7 + $0xc] sm:$0xf]
    %v126 = vperm.slane %v114, 0
    %v132 = vunpack.c.l.b16 %v121
    %v133 = vunpack.c.l.b16 %v122
    %v134 = vunpack.c.l.b16 %v123
    %v135 = vunpack.c.l.b16 %v124
    %v136 = vpack.c.b16 %v133, %v132
    %v137 = vpack.c.b16 %v135, %v134
    %vm140 = vcmask 261120
    %v142 = vsel %vm140, %v119, 0
    %v145 = vsel %vm140, %v120, 0
    %147 = vmatpush.bf16.msra.mxu0 0
    %148 = vmatpush.bf16.msra.mxu0 0
    %149 = vmatpush.bf16.msra.mxu0 0
    %150 = vmatpush.bf16.msra.mxu0 0
    %151 = vmatpush.bf16.msra.mxu0 0
    %152 = vmatpush.bf16.msra.mxu0 0
    %153 = vmatpush.bf16.msra.mxu0 %v137
    %154 = vmatpush.bf16.msra.mxu0 %v136
    %155 = vmatmul.bf16.gmra.mxu0 %v142
    %v156 = vpop.f32.mrf.mxu0
    %v157 = vadd.f32 %v126, %v156
    %v158 = vpop.f32.mrf.mxu0
    %v159 = vadd.f32 %v126, %v158
    %160 = vmatmul.bf16.gmra.mxu0 %v145
    %v161 = vpop.f32.mrf.mxu0
    %v162 = vadd.f32 %v126, %v161
    %v163 = vpop.f32.mrf.mxu0
    %v164 = vadd.f32 %v126, %v163
    %165 = vdwg.mxu0
    %v166 = vpack.c.bf16 %v111, %v110
    %v167 = vpack.c.bf16 %v113, %v112
    %v168 = vld [vmem:[#allocation8] sm:$0xf]
    %v169 = vld [vmem:[#allocation8 + $0x4] sm:$0xf]
    %v170 = vld [vmem:[#allocation8 + $0x8] sm:$0xf]
    %v171 = vld [vmem:[#allocation8 + $0xc] sm:$0xf]
    %v176 = vunpack.c.l.b16 %v168
    %v177 = vunpack.c.l.b16 %v169
    %v178 = vunpack.c.l.b16 %v170
    %v179 = vunpack.c.l.b16 %v171
    %v180 = vpack.c.b16 %v177, %v176
    %v181 = vpack.c.b16 %v179, %v178
    %184 = vrot.lane.b32.xlu0 %v126, 96
    %v185 = vpop.permute.xlu0 %184
    %v188 = vsel %vm140, %v166, 0
    %v191 = vsel %vm140, %v167, 0
    %193 = vmatpush.bf16.msra.mxu0 0
    %194 = vmatpush.bf16.msra.mxu0 0
    %195 = vmatpush.bf16.msra.mxu0 0
    %196 = vmatpush.bf16.msra.mxu0 0
    %197 = vmatpush.bf16.msra.mxu0 0
    %198 = vmatpush.bf16.msra.mxu0 0
    %199 = vmatpush.bf16.msra.mxu0 %v181
    %200 = vmatpush.bf16.msra.mxu0 %v180
    %201 = vmatmul.bf16.gmra.mxu0 %v188
    %v202 = vpop.f32.mrf.mxu0
    %v203 = vadd.f32 %v185, %v202
    %v204 = vpop.f32.mrf.mxu0
    %v205 = vadd.f32 %v185, %v204
    %206 = vmatmul.bf16.gmra.mxu0 %v191
    %v207 = vpop.f32.mrf.mxu0
    %v208 = vadd.f32 %v185, %v207
    %v209 = vpop.f32.mrf.mxu0
    %v210 = vadd.f32 %v185, %v209
    %211 = vdwg.mxu0
    %v212 = vpack.c.bf16 %v157, %v157
    %v213 = vpack.c.bf16 %v159, %v159
    %v214 = vpack.c.bf16 %v162, %v162
    %v215 = vpack.c.bf16 %v164, %v164
    %v216 = vpack.c.bf16 %v203, %v203
    %v217 = vpack.c.bf16 %v205, %v205
    %v218 = vpack.c.bf16 %v208, %v208
    %v219 = vpack.c.bf16 %v210, %v210
    %v222 = vunpack.c.l.b16 %v212
    %v223 = vunpack.c.l.b16 %v213
    %v224 = vpack.c.b16 %v223, %v222
    %v227 = vunpack.c.l.b16 %v216
    %v228 = vunpack.c.l.b16 %v217
    %v229 = vpack.c.b16 %v228, %v227
    %vm230 = vcmask 64512
    %v232 = vsel %vm230, %v224, 0
    %v235 = vsel %vm230, %v229, 0
    %237 = vmatpush.bf16.xpose.msra.mxu0 0
    %238 = vmatpush.bf16.xpose.msra.mxu0 0
    %239 = vmatpush.bf16.xpose.msra.mxu0 0
    %240 = vmatpush.bf16.xpose.msra.mxu0 0
    %241 = vmatpush.bf16.xpose.msra.mxu0 0
    %242 = vmatpush.bf16.xpose.msra.mxu0 0
    %243 = vmatpush.bf16.xpose.msra.mxu0 0
    %244 = vmatpush.bf16.xpose.msra.mxu0 %v235
    %245 = vmatmul.bf16.gmra.mxu0 %v232
    %v246 = vpop.f32.mrf.mxu0
    %v247 = vadd.f32 0.0, %v246
    %v248 = vpop.f32.mrf.mxu0
    %v249 = vadd.f32 0.0, %v248
    %250 = vdwg.mxu0
    %v253 = vunpack.c.l.b16 %v214
    %v254 = vunpack.c.l.b16 %v215
    %v255 = vpack.c.b16 %v254, %v253
    %v258 = vunpack.c.l.b16 %v218
    %v259 = vunpack.c.l.b16 %v219
    %v260 = vpack.c.b16 %v259, %v258
    %v262 = vsel %vm230, %v255, 0
    %v265 = vsel %vm230, %v260, 0
    %267 = vmatpush.bf16.xpose.msra.mxu0 0
    %268 = vmatpush.bf16.xpose.msra.mxu0 0
    %269 = vmatpush.bf16.xpose.msra.mxu0 0
    %270 = vmatpush.bf16.xpose.msra.mxu0 0
    %271 = vmatpush.bf16.xpose.msra.mxu0 0
    %272 = vmatpush.bf16.xpose.msra.mxu0 0
    %273 = vmatpush.bf16.xpose.msra.mxu0 0
    %274 = vmatpush.bf16.xpose.msra.mxu0 %v265
    %275 = vmatmul.bf16.gmra.mxu0 %v262
    %v276 = vpop.f32.mrf.mxu0
    %v277 = vadd.f32 0.0, %v276
    %v278 = vpop.f32.mrf.mxu0
    %v279 = vadd.f32 0.0, %v278
    %280 = vdwg.mxu0
    %vm281 = vcmask 130048
    %v282 = vsel %vm281, %v247, -inf
    %283 = vmax.xlane.f32.xlu0 %v282
    %v284 = vpop.xlane.xlu0 %283
    %v285 = vsel %vm281, %v249, -inf
    %286 = vmax.xlane.f32.xlu0 %v285
    %v287 = vpop.xlane.xlu0 %286
    %v288 = vsel %vm281, %v277, -inf
    %289 = vmax.xlane.f32.xlu0 %v288
    %v290 = vpop.xlane.xlu0 %289
    %v291 = vsel %vm281, %v279, -inf
    %292 = vmax.xlane.f32.xlu0 %v291
    %v293 = vpop.xlane.xlu0 %292
    %v294 = vsub.f32 %v247, %v284
    %v295 = vsub.f32 %v249, %v287
    %v296 = vsub.f32 %v277, %v290
    %v297 = vsub.f32 %v279, %v293
    %v298 = vmul.f32 %v294, 1.442695
    %v299 = vpow.pop %v298
    %v300 = vmul.f32 %v295, 1.442695
    %v301 = vpow.pop %v300
    %v302 = vmul.f32 %v296, 1.442695
    %v303 = vpow.pop %v302
    %v304 = vmul.f32 %v297, 1.442695
    %v305 = vpow.pop %v304
    %v306 = vsel %vm281, %v299, 0.0
    %307 = vadd.xlane.f32.xlu0 %v306
    %v308 = vpop.xlane.xlu0 %307
    %v309 = vsel %vm281, %v301, 0.0
    %310 = vadd.xlane.f32.xlu0 %v309
    %v311 = vpop.xlane.xlu0 %310
    %v312 = vsel %vm281, %v303, 0.0
    %313 = vadd.xlane.f32.xlu0 %v312
    %v314 = vpop.xlane.xlu0 %313
    %v315 = vsel %vm281, %v305, 0.0
    %316 = vadd.xlane.f32.xlu0 %v315
    %v317 = vpop.xlane.xlu0 %316
    %v318 = vrcp.pop %v308
    %v319 = vmul.f32 %v308, %v318
    %v320 = vsub.f32 1.0, %v319
    %v321 = vmul.f32 %v318, %v320
    %v322 = vadd.f32 %v318, %v321
    %vm323 = vweird.f32 %v308
    %vm324 = vweird.f32 %v318
    %vm325 = vmor %vm323, %vm324
    %v326 = vsel %vm325, %v318, %v322
    %v327 = vand.u32 2147483647, %v308
    %vm328 = vcmp.eq.f32.partialorder %v327, 8.507059e+37
    %v329 = vand.u32 %v308, 2147483648
    %v330 = vor.u32 1.1754944e-38, %v329
    %v331 = vsel %vm328, %v330, %v326
    %v332 = vmul.f32 %v299, %v331
    %v333 = vrcp.pop %v311
    %v334 = vmul.f32 %v311, %v333
    %v335 = vsub.f32 1.0, %v334
    %v336 = vmul.f32 %v333, %v335
    %v337 = vadd.f32 %v333, %v336
    %vm338 = vweird.f32 %v311
    %vm339 = vweird.f32 %v333
    %vm340 = vmor %vm338, %vm339
    %v341 = vsel %vm340, %v333, %v337
    %v342 = vand.u32 2147483647, %v311
    %vm343 = vcmp.eq.f32.partialorder %v342, 8.507059e+37
    %v344 = vand.u32 %v311, 2147483648
    %v345 = vor.u32 1.1754944e-38, %v344
    %v346 = vsel %vm343, %v345, %v341
    %v347 = vmul.f32 %v301, %v346
    %v348 = vrcp.pop %v314
    %v349 = vmul.f32 %v314, %v348
    %v350 = vsub.f32 1.0, %v349
    %v351 = vmul.f32 %v348, %v350
    %v352 = vadd.f32 %v348, %v351
    %vm353 = vweird.f32 %v314
    %vm354 = vweird.f32 %v348
    %vm355 = vmor %vm353, %vm354
    %v356 = vsel %vm355, %v348, %v352
    %v357 = vand.u32 2147483647, %v314
    %vm358 = vcmp.eq.f32.partialorder %v357, 8.507059e+37
    %v359 = vand.u32 %v314, 2147483648
    %v360 = vor.u32 1.1754944e-38, %v359
    %v361 = vsel %vm358, %v360, %v356
    %v362 = vmul.f32 %v303, %v361
    %v363 = vrcp.pop %v317
    %v364 = vmul.f32 %v317, %v363
    %v365 = vsub.f32 1.0, %v364
    %v366 = vmul.f32 %v363, %v365
    %v367 = vadd.f32 %v363, %v366
    %vm368 = vweird.f32 %v317
    %vm369 = vweird.f32 %v363
    %vm370 = vmor %vm368, %vm369
    %v371 = vsel %vm370, %v363, %v367
    %v372 = vand.u32 2147483647, %v317
    %vm373 = vcmp.eq.f32.partialorder %v372, 8.507059e+37
    %v374 = vand.u32 %v317, 2147483648
    %v375 = vor.u32 1.1754944e-38, %v374
    %v376 = vsel %vm373, %v375, %v371
    %v377 = vmul.f32 %v305, %v376
    %v378 = vpack.c.bf16 %v332, %v332
    %v379 = vpack.c.bf16 %v347, %v347
    %v380 = vpack.c.bf16 %v362, %v362
    %v381 = vpack.c.bf16 %v377, %v377
    %v384 = vunpack.c.l.b16 %v378
    %v385 = vunpack.c.l.b16 %v379
    %v386 = vpack.c.b16 %v385, %v384
    %387 = vrot.lane.b32.xlu0 %v229, 96
    %v388 = vpop.permute.xlu0 %387
    %v391 = vsel %vm281, %v386, 0
    %393 = vmatpush.bf16.msra.mxu0 0
    %394 = vmatpush.bf16.msra.mxu0 0
    %395 = vmatpush.bf16.msra.mxu0 0
    %396 = vmatpush.bf16.msra.mxu0 0
    %397 = vmatpush.bf16.msra.mxu0 0
    %398 = vmatpush.bf16.msra.mxu0 0
    %399 = vmatpush.bf16.msra.mxu0 0
    %400 = vmatpush.bf16.msra.mxu0 %v388
    %401 = vmatmul.bf16.gmra.mxu0 %v391
    %v402 = vpop.f32.mrf.mxu0
    %v403 = vadd.f32 0.0, %v402
    %v404 = vpop.f32.mrf.mxu0
    %v405 = vadd.f32 0.0, %v404
    %406 = vdwg.mxu0
    %v409 = vunpack.c.l.b16 %v380
    %v410 = vunpack.c.l.b16 %v381
    %v411 = vpack.c.b16 %v410, %v409
    %412 = vrot.lane.b32.xlu0 %v260, 96
    %v413 = vpop.permute.xlu0 %412
    %v416 = vsel %vm281, %v411, 0
    %418 = vmatpush.bf16.msra.mxu0 0
    %419 = vmatpush.bf16.msra.mxu0 0
    %420 = vmatpush.bf16.msra.mxu0 0
    %421 = vmatpush.bf16.msra.mxu0 0
    %422 = vmatpush.bf16.msra.mxu0 0
    %423 = vmatpush.bf16.msra.mxu0 0
    %424 = vmatpush.bf16.msra.mxu0 0
    %425 = vmatpush.bf16.msra.mxu0 %v413
    %426 = vmatmul.bf16.gmra.mxu0 %v416
    %v427 = vpop.f32.mrf.mxu0
    %v428 = vadd.f32 0.0, %v427
    %v429 = vpop.f32.mrf.mxu0
    %v430 = vadd.f32 0.0, %v429
    %431 = vdwg.mxu0
    %v432 = vpack.c.bf16 %v405, %v403
    %v433 = vpack.c.bf16 %v430, %v428
    %434 = vrot.lane.b32.xlu0 %v224, 120
    %v435 = vpop.permute.xlu0 %434
    %436 = vrot.lane.b32.xlu0 %v229, 120
    %v437 = vpop.permute.xlu0 %436
    %v439 = vsel %vm230, %v435, 0
    %v442 = vsel %vm230, %v437, 0
    %444 = vmatpush.bf16.xpose.msra.mxu0 0
    %445 = vmatpush.bf16.xpose.msra.mxu0 0
    %446 = vmatpush.bf16.xpose.msra.mxu0 0
    %447 = vmatpush.bf16.xpose.msra.mxu0 0
    %448 = vmatpush.bf16.xpose.msra.mxu0 0
    %449 = vmatpush.bf16.xpose.msra.mxu0 0
    %450 = vmatpush.bf16.xpose.msra.mxu0 0
    %451 = vmatpush.bf16.xpose.msra.mxu0 %v442
    %452 = vmatmul.bf16.gmra.mxu0 %v439
    %v453 = vpop.f32.mrf.mxu0
    %v454 = vadd.f32 0.0, %v453
    %v455 = vpop.f32.mrf.mxu0
    %v456 = vadd.f32 0.0, %v455
    %457 = vdwg.mxu0
    %458 = vrot.lane.b32.xlu0 %v255, 120
    %v459 = vpop.permute.xlu0 %458
    %460 = vrot.lane.b32.xlu0 %v260, 120
    %v461 = vpop.permute.xlu0 %460
    %v463 = vsel %vm230, %v459, 0
    %v466 = vsel %vm230, %v461, 0
    %468 = vmatpush.bf16.xpose.msra.mxu0 0
    %469 = vmatpush.bf16.xpose.msra.mxu0 0
    %470 = vmatpush.bf16.xpose.msra.mxu0 0
    %471 = vmatpush.bf16.xpose.msra.mxu0 0
    %472 = vmatpush.bf16.xpose.msra.mxu0 0
    %473 = vmatpush.bf16.xpose.msra.mxu0 0
    %474 = vmatpush.bf16.xpose.msra.mxu0 0
    %475 = vmatpush.bf16.xpose.msra.mxu0 %v466
    %476 = vmatmul.bf16.gmra.mxu0 %v463
    %v477 = vpop.f32.mrf.mxu0
    %v478 = vadd.f32 0.0, %v477
    %v479 = vpop.f32.mrf.mxu0
    %v480 = vadd.f32 0.0, %v479
    %481 = vdwg.mxu0
    %v482 = vsel %vm281, %v454, -inf
    %483 = vmax.xlane.f32.xlu0 %v482
    %v484 = vpop.xlane.xlu0 %483
    %v485 = vsel %vm281, %v456, -inf
    %486 = vmax.xlane.f32.xlu0 %v485
    %v487 = vpop.xlane.xlu0 %486
    %v488 = vsel %vm281, %v478, -inf
    %489 = vmax.xlane.f32.xlu0 %v488
    %v490 = vpop.xlane.xlu0 %489
    %v491 = vsel %vm281, %v480, -inf
    %492 = vmax.xlane.f32.xlu0 %v491
    %v493 = vpop.xlane.xlu0 %492
    %v494 = vsub.f32 %v454, %v484
    %v495 = vsub.f32 %v456, %v487
    %v496 = vsub.f32 %v478, %v490
    %v497 = vsub.f32 %v480, %v493
    %v498 = vmul.f32 %v494, 1.442695
    %v499 = vpow.pop %v498
    %v500 = vmul.f32 %v495, 1.442695
    %v501 = vpow.pop %v500
    %v502 = vmul.f32 %v496, 1.442695
    %v503 = vpow.pop %v502
    %v504 = vmul.f32 %v497, 1.442695
    %v505 = vpow.pop %v504
    %v506 = vsel %vm281, %v499, 0.0
    %507 = vadd.xlane.f32.xlu0 %v506
    %v508 = vpop.xlane.xlu0 %507
    %v509 = vsel %vm281, %v501, 0.0
    %510 = vadd.xlane.f32.xlu0 %v509
    %v511 = vpop.xlane.xlu0 %510
    %v512 = vsel %vm281, %v503, 0.0
    %513 = vadd.xlane.f32.xlu0 %v512
    %v514 = vpop.xlane.xlu0 %513
    %v515 = vsel %vm281, %v505, 0.0
    %516 = vadd.xlane.f32.xlu0 %v515
    %v517 = vpop.xlane.xlu0 %516
    %v518 = vrcp.pop %v508
    %v519 = vmul.f32 %v508, %v518
    %v520 = vsub.f32 1.0, %v519
    %v521 = vmul.f32 %v518, %v520
    %v522 = vadd.f32 %v518, %v521
    %vm523 = vweird.f32 %v508
    %vm524 = vweird.f32 %v518
    %vm525 = vmor %vm523, %vm524
    %v526 = vsel %vm525, %v518, %v522
    %v527 = vand.u32 2147483647, %v508
    %vm528 = vcmp.eq.f32.partialorder %v527, 8.507059e+37
    %v529 = vand.u32 %v508, 2147483648
    %v530 = vor.u32 1.1754944e-38, %v529
    %v531 = vsel %vm528, %v530, %v526
    %v532 = vmul.f32 %v499, %v531
    %v533 = vrcp.pop %v511
    %v534 = vmul.f32 %v511, %v533
    %v535 = vsub.f32 1.0, %v534
    %v536 = vmul.f32 %v533, %v535
    %v537 = vadd.f32 %v533, %v536
    %vm538 = vweird.f32 %v511
    %vm539 = vweird.f32 %v533
    %vm540 = vmor %vm538, %vm539
    %v541 = vsel %vm540, %v533, %v537
    %v542 = vand.u32 2147483647, %v511
    %vm543 = vcmp.eq.f32.partialorder %v542, 8.507059e+37
    %v544 = vand.u32 %v511, 2147483648
    %v545 = vor.u32 1.1754944e-38, %v544
    %v546 = vsel %vm543, %v545, %v541
    %v547 = vmul.f32 %v501, %v546
    %v548 = vrcp.pop %v514
    %v549 = vmul.f32 %v514, %v548
    %v550 = vsub.f32 1.0, %v549
    %v551 = vmul.f32 %v548, %v550
    %v552 = vadd.f32 %v548, %v551
    %vm553 = vweird.f32 %v514
    %vm554 = vweird.f32 %v548
    %vm555 = vmor %vm553, %vm554
    %v556 = vsel %vm555, %v548, %v552
    %v557 = vand.u32 2147483647, %v514
    %vm558 = vcmp.eq.f32.partialorder %v557, 8.507059e+37
    %v559 = vand.u32 %v514, 2147483648
    %v560 = vor.u32 1.1754944e-38, %v559
    %v561 = vsel %vm558, %v560, %v556
    %v562 = vmul.f32 %v503, %v561
    %v563 = vrcp.pop %v517
    %v564 = vmul.f32 %v517, %v563
    %v565 = vsub.f32 1.0, %v564
    %v566 = vmul.f32 %v563, %v565
    %v567 = vadd.f32 %v563, %v566
    %vm568 = vweird.f32 %v517
    %vm569 = vweird.f32 %v563
    %vm570 = vmor %vm568, %vm569
    %v571 = vsel %vm570, %v563, %v567
    %v572 = vand.u32 2147483647, %v517
    %vm573 = vcmp.eq.f32.partialorder %v572, 8.507059e+37
    %v574 = vand.u32 %v517, 2147483648
    %v575 = vor.u32 1.1754944e-38, %v574
    %v576 = vsel %vm573, %v575, %v571
    %v577 = vmul.f32 %v505, %v576
    %v578 = vpack.c.bf16 %v532, %v532
    %v579 = vpack.c.bf16 %v547, %v547
    %v580 = vpack.c.bf16 %v562, %v562
    %v581 = vpack.c.bf16 %v577, %v577
    %v584 = vunpack.c.l.b16 %v578
    %v585 = vunpack.c.l.b16 %v579
    %v586 = vpack.c.b16 %v585, %v584
    %587 = vrot.lane.b32.xlu0 %v229, 88
    %v588 = vpop.permute.xlu0 %587
    %v591 = vsel %vm281, %v586, 0
    %593 = vmatpush.bf16.msra.mxu0 0
    %594 = vmatpush.bf16.msra.mxu0 0
    %595 = vmatpush.bf16.msra.mxu0 0
    %596 = vmatpush.bf16.msra.mxu0 0
    %597 = vmatpush.bf16.msra.mxu0 0
    %598 = vmatpush.bf16.msra.mxu0 0
    %599 = vmatpush.bf16.msra.mxu0 0
    %600 = vmatpush.bf16.msra.mxu0 %v588
    %601 = vmatmul.bf16.gmra.mxu0 %v591
    %v602 = vpop.f32.mrf.mxu0
    %v603 = vadd.f32 0.0, %v602
    %v604 = vpop.f32.mrf.mxu0
    %v605 = vadd.f32 0.0, %v604
    %606 = vdwg.mxu0
    %v609 = vunpack.c.l.b16 %v580
    %v610 = vunpack.c.l.b16 %v581
    %v611 = vpack.c.b16 %v610, %v609
    %612 = vrot.lane.b32.xlu0 %v260, 88
    %v613 = vpop.permute.xlu0 %612
    %v616 = vsel %vm281, %v611, 0
    %618 = vmatpush.bf16.msra.mxu0 0
    %619 = vmatpush.bf16.msra.mxu0 0
    %620 = vmatpush.bf16.msra.mxu0 0
    %621 = vmatpush.bf16.msra.mxu0 0
    %622 = vmatpush.bf16.msra.mxu0 0
    %623 = vmatpush.bf16.msra.mxu0 0
    %624 = vmatpush.bf16.msra.mxu0 0
    %625 = vmatpush.bf16.msra.mxu0 %v613
    %626 = vmatmul.bf16.gmra.mxu0 %v616
    %v627 = vpop.f32.mrf.mxu0
    %v628 = vadd.f32 0.0, %v627
    %v629 = vpop.f32.mrf.mxu0
    %v630 = vadd.f32 0.0, %v629
    %631 = vdwg.mxu0
    %v632 = vpack.c.bf16 %v605, %v603
    %v633 = vpack.c.bf16 %v630, %v628
    %v635 = vsel %vm230, %v632, 0
    %v638 = vsel %vm230, %v633, 0
    %vm640 = vcmask 1043456
    %v642 = vsel %vm640, %v116, 0
    %644 = vmatpush.bf16.msra.mxu0 0
    %645 = vmatpush.bf16.msra.mxu0 0
    %646 = vmatpush.bf16.msra.mxu0 0
    %647 = vmatpush.bf16.msra.mxu0 0
    %648 = vmatpush.bf16.msra.mxu0 0
    %649 = vmatpush.bf16.msra.mxu0 0
    %650 = vmatpush.bf16.msra.mxu0 0
    %651 = vmatpush.bf16.msra.mxu0 %v642
    %652 = vmatmul.bf16.gmra.mxu0 %v635
    %v653 = vpop.f32.mrf.mxu0
    %v654 = vadd.f32 0.0, %v653
    %v655 = vpop.f32.mrf.mxu0
    %v656 = vadd.f32 0.0, %v655
    %657 = vmatmul.bf16.gmra.mxu0 %v638
    %v658 = vpop.f32.mrf.mxu0
    %v659 = vadd.f32 0.0, %v658
    %v660 = vpop.f32.mrf.mxu0
    %v661 = vadd.f32 0.0, %v660
    %662 = vdwg.mxu0
    %v664 = vsel %vm230, %v432, 0
    %v667 = vsel %vm230, %v433, 0
    %v670 = vsel %vm640, %v115, 0
    %672 = vmatpush.bf16.msra.mxu0 0
    %673 = vmatpush.bf16.msra.mxu0 0
    %674 = vmatpush.bf16.msra.mxu0 0
    %675 = vmatpush.bf16.msra.mxu0 0
    %676 = vmatpush.bf16.msra.mxu0 0
    %677 = vmatpush.bf16.msra.mxu0 0
    %678 = vmatpush.bf16.msra.mxu0 0
    %679 = vmatpush.bf16.msra.mxu0 %v670
    %680 = vmatmul.bf16.gmra.mxu0 %v664
    %v681 = vpop.f32.mrf.mxu0
    %v682 = vadd.f32 %v654, %v681
    %v683 = vpop.f32.mrf.mxu0
    %v684 = vadd.f32 %v656, %v683
    %685 = vmatmul.bf16.gmra.mxu0 %v667
    %v686 = vpop.f32.mrf.mxu0
    %v687 = vadd.f32 %v659, %v686
    %v688 = vpop.f32.mrf.mxu0
    %v689 = vadd.f32 %v661, %v688
    %690 = vdwg.mxu0
    %691 = vrot.lane.b32.xlu0 %v224, 112
    %v692 = vpop.permute.xlu0 %691
    %693 = vrot.lane.b32.xlu0 %v229, 112
    %v694 = vpop.permute.xlu0 %693
    %v696 = vsel %vm230, %v692, 0
    %v699 = vsel %vm230, %v694, 0
    %701 = vmatpush.bf16.xpose.msra.mxu0 0
    %702 = vmatpush.bf16.xpose.msra.mxu0 0
    %703 = vmatpush.bf16.xpose.msra.mxu0 0
    %704 = vmatpush.bf16.xpose.msra.mxu0 0
    %705 = vmatpush.bf16.xpose.msra.mxu0 0
    %706 = vmatpush.bf16.xpose.msra.mxu0 0
    %707 = vmatpush.bf16.xpose.msra.mxu0 0
    %708 = vmatpush.bf16.xpose.msra.mxu0 %v699
    %709 = vmatmul.bf16.gmra.mxu0 %v696
    %v710 = vpop.f32.mrf.mxu0
    %v711 = vadd.f32 0.0, %v710
    %v712 = vpop.f32.mrf.mxu0
    %v713 = vadd.f32 0.0, %v712
    %714 = vdwg.mxu0
    %715 = vrot.lane.b32.xlu0 %v255, 112
    %v716 = vpop.permute.xlu0 %715
    %717 = vrot.lane.b32.xlu0 %v260, 112
    %v718 = vpop.permute.xlu0 %717
    %v720 = vsel %vm230, %v716, 0
    %v723 = vsel %vm230, %v718, 0
    %725 = vmatpush.bf16.xpose.msra.mxu0 0
    %726 = vmatpush.bf16.xpose.msra.mxu0 0
    %727 = vmatpush.bf16.xpose.msra.mxu0 0
    %728 = vmatpush.bf16.xpose.msra.mxu0 0
    %729 = vmatpush.bf16.xpose.msra.mxu0 0
    %730 = vmatpush.bf16.xpose.msra.mxu0 0
    %731 = vmatpush.bf16.xpose.msra.mxu0 0
    %732 = vmatpush.bf16.xpose.msra.mxu0 %v723
    %733 = vmatmul.bf16.gmra.mxu0 %v720
    %v734 = vpop.f32.mrf.mxu0
    %v735 = vadd.f32 0.0, %v734
    %v736 = vpop.f32.mrf.mxu0
    %v737 = vadd.f32 0.0, %v736
    %738 = vdwg.mxu0
    %v739 = vsel %vm281, %v711, -inf
    %740 = vmax.xlane.f32.xlu0 %v739
    %v741 = vpop.xlane.xlu0 %740
    %v742 = vsel %vm281, %v713, -inf
    %743 = vmax.xlane.f32.xlu0 %v742
    %v744 = vpop.xlane.xlu0 %743
    %v745 = vsel %vm281, %v735, -inf
    %746 = vmax.xlane.f32.xlu0 %v745
    %v747 = vpop.xlane.xlu0 %746
    %v748 = vsel %vm281, %v737, -inf
    %749 = vmax.xlane.f32.xlu0 %v748
    %v750 = vpop.xlane.xlu0 %749
    %v751 = vsub.f32 %v711, %v741
    %v752 = vsub.f32 %v713, %v744
    %v753 = vsub.f32 %v735, %v747
    %v754 = vsub.f32 %v737, %v750
    %v755 = vmul.f32 %v751, 1.442695
    %v756 = vpow.pop %v755
    %v757 = vmul.f32 %v752, 1.442695
    %v758 = vpow.pop %v757
    %v759 = vmul.f32 %v753, 1.442695
    %v760 = vpow.pop %v759
    %v761 = vmul.f32 %v754, 1.442695
    %v762 = vpow.pop %v761
    %v763 = vsel %vm281, %v756, 0.0
    %764 = vadd.xlane.f32.xlu0 %v763
    %v765 = vpop.xlane.xlu0 %764
    %v766 = vsel %vm281, %v758, 0.0
    %767 = vadd.xlane.f32.xlu0 %v766
    %v768 = vpop.xlane.xlu0 %767
    %v769 = vsel %vm281, %v760, 0.0
    %770 = vadd.xlane.f32.xlu0 %v769
    %v771 = vpop.xlane.xlu0 %770
    %v772 = vsel %vm281, %v762, 0.0
    %773 = vadd.xlane.f32.xlu0 %v772
    %v774 = vpop.xlane.xlu0 %773
    %v775 = vrcp.pop %v765
    %v776 = vmul.f32 %v765, %v775
    %v777 = vsub.f32 1.0, %v776
    %v778 = vmul.f32 %v775, %v777
    %v779 = vadd.f32 %v775, %v778
    %vm780 = vweird.f32 %v765
    %vm781 = vweird.f32 %v775
    %vm782 = vmor %vm780, %vm781
    %v783 = vsel %vm782, %v775, %v779
    %v784 = vand.u32 2147483647, %v765
    %vm785 = vcmp.eq.f32.partialorder %v784, 8.507059e+37
    %v786 = vand.u32 %v765, 2147483648
    %v787 = vor.u32 1.1754944e-38, %v786
    %v788 = vsel %vm785, %v787, %v783
    %v789 = vmul.f32 %v756, %v788
    %v790 = vrcp.pop %v768
    %v791 = vmul.f32 %v768, %v790
    %v792 = vsub.f32 1.0, %v791
    %v793 = vmul.f32 %v790, %v792
    %v794 = vadd.f32 %v790, %v793
    %vm795 = vweird.f32 %v768
    %vm796 = vweird.f32 %v790
    %vm797 = vmor %vm795, %vm796
    %v798 = vsel %vm797, %v790, %v794
    %v799 = vand.u32 2147483647, %v768
    %vm800 = vcmp.eq.f32.partialorder %v799, 8.507059e+37
    %v801 = vand.u32 %v768, 2147483648
    %v802 = vor.u32 1.1754944e-38, %v801
    %v803 = vsel %vm800, %v802, %v798
    %v804 = vmul.f32 %v758, %v803
    %v805 = vrcp.pop %v771
    %v806 = vmul.f32 %v771, %v805
    %v807 = vsub.f32 1.0, %v806
    %v808 = vmul.f32 %v805, %v807
    %v809 = vadd.f32 %v805, %v808
    %vm810 = vweird.f32 %v771
    %vm811 = vweird.f32 %v805
    %vm812 = vmor %vm810, %vm811
    %v813 = vsel %vm812, %v805, %v809
    %v814 = vand.u32 2147483647, %v771
    %vm815 = vcmp.eq.f32.partialorder %v814, 8.507059e+37
    %v816 = vand.u32 %v771, 2147483648
    %v817 = vor.u32 1.1754944e-38, %v816
    %v818 = vsel %vm815, %v817, %v813
    %v819 = vmul.f32 %v760, %v818
    %v820 = vrcp.pop %v774
    %v821 = vmul.f32 %v774, %v820
    %v822 = vsub.f32 1.0, %v821
    %v823 = vmul.f32 %v820, %v822
    %v824 = vadd.f32 %v820, %v823
    %vm825 = vweird.f32 %v774
    %vm826 = vweird.f32 %v820
    %vm827 = vmor %vm825, %vm826
    %v828 = vsel %vm827, %v820, %v824
    %v829 = vand.u32 2147483647, %v774
    %vm830 = vcmp.eq.f32.partialorder %v829, 8.507059e+37
    %v831 = vand.u32 %v774, 2147483648
    %v832 = vor.u32 1.1754944e-38, %v831
    %v833 = vsel %vm830, %v832, %v828
    %v834 = vmul.f32 %v762, %v833
    %v835 = vpack.c.bf16 %v789, %v789
    %v836 = vpack.c.bf16 %v804, %v804
    %v837 = vpack.c.bf16 %v819, %v819
    %v838 = vpack.c.bf16 %v834, %v834
    %v841 = vunpack.c.l.b16 %v835
    %v842 = vunpack.c.l.b16 %v836
    %v843 = vpack.c.b16 %v842, %v841
    %844 = vrot.lane.b32.xlu0 %v229, 80
    %v845 = vpop.permute.xlu0 %844
    %v848 = vsel %vm281, %v843, 0
    %850 = vmatpush.bf16.msra.mxu0 0
    %851 = vmatpush.bf16.msra.mxu0 0
    %852 = vmatpush.bf16.msra.mxu0 0
    %853 = vmatpush.bf16.msra.mxu0 0
    %854 = vmatpush.bf16.msra.mxu0 0
    %855 = vmatpush.bf16.msra.mxu0 0
    %856 = vmatpush.bf16.msra.mxu0 0
    %857 = vmatpush.bf16.msra.mxu0 %v845
    %858 = vmatmul.bf16.gmra.mxu0 %v848
    %v859 = vpop.f32.mrf.mxu0
    %v860 = vadd.f32 0.0, %v859
    %v861 = vpop.f32.mrf.mxu0
    %v862 = vadd.f32 0.0, %v861
    %863 = vdwg.mxu0
    %v866 = vunpack.c.l.b16 %v837
    %v867 = vunpack.c.l.b16 %v838
    %v868 = vpack.c.b16 %v867, %v866
    %869 = vrot.lane.b32.xlu0 %v260, 80
    %v870 = vpop.permute.xlu0 %869
    %v873 = vsel %vm281, %v868, 0
    %875 = vmatpush.bf16.msra.mxu0 0
    %876 = vmatpush.bf16.msra.mxu0 0
    %877 = vmatpush.bf16.msra.mxu0 0
    %878 = vmatpush.bf16.msra.mxu0 0
    %879 = vmatpush.bf16.msra.mxu0 0
    %880 = vmatpush.bf16.msra.mxu0 0
    %881 = vmatpush.bf16.msra.mxu0 0
    %882 = vmatpush.bf16.msra.mxu0 %v870
    %883 = vmatmul.bf16.gmra.mxu0 %v873
    %v884 = vpop.f32.mrf.mxu0
    %v885 = vadd.f32 0.0, %v884
    %v886 = vpop.f32.mrf.mxu0
    %v887 = vadd.f32 0.0, %v886
    %888 = vdwg.mxu0
    %v889 = vpack.c.bf16 %v862, %v860
    %v890 = vpack.c.bf16 %v887, %v885
    %v892 = vsel %vm230, %v889, 0
    %v895 = vsel %vm230, %v890, 0
    %v898 = vsel %vm640, %v117, 0
    %900 = vmatpush.bf16.msra.mxu0 0
    %901 = vmatpush.bf16.msra.mxu0 0
    %902 = vmatpush.bf16.msra.mxu0 0
    %903 = vmatpush.bf16.msra.mxu0 0
    %904 = vmatpush.bf16.msra.mxu0 0
    %905 = vmatpush.bf16.msra.mxu0 0
    %906 = vmatpush.bf16.msra.mxu0 0
    %907 = vmatpush.bf16.msra.mxu0 %v898
    %908 = vmatmul.bf16.gmra.mxu0 %v892
    %v909 = vpop.f32.mrf.mxu0
    %v910 = vadd.f32 0.0, %v909
    %v911 = vpop.f32.mrf.mxu0
    %v912 = vadd.f32 0.0, %v911
    %913 = vmatmul.bf16.gmra.mxu0 %v895
    %v914 = vpop.f32.mrf.mxu0
    %v915 = vadd.f32 0.0, %v914
    %v916 = vpop.f32.mrf.mxu0
    %v917 = vadd.f32 0.0, %v916
    %918 = vdwg.mxu0
    %v919 = vadd.f32 %v682, %v910
    %v920 = vadd.f32 %v684, %v912
    %v921 = vadd.f32 %v687, %v915
    %v922 = vadd.f32 %v689, %v917
    %923 = vrot.lane.b32.xlu0 %v224, 104
    %v924 = vpop.permute.xlu0 %923
    %925 = vrot.lane.b32.xlu0 %v229, 104
    %v926 = vpop.permute.xlu0 %925
    %v928 = vsel %vm230, %v924, 0
    %v931 = vsel %vm230, %v926, 0
    %933 = vmatpush.bf16.xpose.msra.mxu0 0
    %934 = vmatpush.bf16.xpose.msra.mxu0 0
    %935 = vmatpush.bf16.xpose.msra.mxu0 0
    %936 = vmatpush.bf16.xpose.msra.mxu0 0
    %937 = vmatpush.bf16.xpose.msra.mxu0 0
    %938 = vmatpush.bf16.xpose.msra.mxu0 0
    %939 = vmatpush.bf16.xpose.msra.mxu0 0
    %940 = vmatpush.bf16.xpose.msra.mxu0 %v931
    %941 = vmatmul.bf16.gmra.mxu0 %v928
    %v942 = vpop.f32.mrf.mxu0
    %v943 = vadd.f32 0.0, %v942
    %v944 = vpop.f32.mrf.mxu0
    %v945 = vadd.f32 0.0, %v944
    %946 = vdwg.mxu0
    %947 = vrot.lane.b32.xlu0 %v255, 104
    %v948 = vpop.permute.xlu0 %947
    %949 = vrot.lane.b32.xlu0 %v260, 104
    %v950 = vpop.permute.xlu0 %949
    %v952 = vsel %vm230, %v948, 0
    %v955 = vsel %vm230, %v950, 0
    %957 = vmatpush.bf16.xpose.msra.mxu0 0
    %958 = vmatpush.bf16.xpose.msra.mxu0 0
    %959 = vmatpush.bf16.xpose.msra.mxu0 0
    %960 = vmatpush.bf16.xpose.msra.mxu0 0
    %961 = vmatpush.bf16.xpose.msra.mxu0 0
    %962 = vmatpush.bf16.xpose.msra.mxu0 0
    %963 = vmatpush.bf16.xpose.msra.mxu0 0
    %964 = vmatpush.bf16.xpose.msra.mxu0 %v955
    %965 = vmatmul.bf16.gmra.mxu0 %v952
    %v966 = vpop.f32.mrf.mxu0
    %v967 = vadd.f32 0.0, %v966
    %v968 = vpop.f32.mrf.mxu0
    %v969 = vadd.f32 0.0, %v968
    %970 = vdwg.mxu0
    %v971 = vsel %vm281, %v943, -inf
    %972 = vmax.xlane.f32.xlu0 %v971
    %v973 = vpop.xlane.xlu0 %972
    %v974 = vsel %vm281, %v945, -inf
    %975 = vmax.xlane.f32.xlu0 %v974
    %v976 = vpop.xlane.xlu0 %975
    %v977 = vsel %vm281, %v967, -inf
    %978 = vmax.xlane.f32.xlu0 %v977
    %v979 = vpop.xlane.xlu0 %978
    %v980 = vsel %vm281, %v969, -inf
    %981 = vmax.xlane.f32.xlu0 %v980
    %v982 = vpop.xlane.xlu0 %981
    %v983 = vsub.f32 %v943, %v973
    %v984 = vsub.f32 %v945, %v976
    %v985 = vsub.f32 %v967, %v979
    %v986 = vsub.f32 %v969, %v982
    %v987 = vmul.f32 %v983, 1.442695
    %v988 = vpow.pop %v987
    %v989 = vmul.f32 %v984, 1.442695
    %v990 = vpow.pop %v989
    %v991 = vmul.f32 %v985, 1.442695
    %v992 = vpow.pop %v991
    %v993 = vmul.f32 %v986, 1.442695
    %v994 = vpow.pop %v993
    %v995 = vsel %vm281, %v988, 0.0
    %996 = vadd.xlane.f32.xlu0 %v995
    %v997 = vpop.xlane.xlu0 %996
    %v998 = vsel %vm281, %v990, 0.0
    %999 = vadd.xlane.f32.xlu0 %v998
    %v1000 = vpop.xlane.xlu0 %999
    %v1001 = vsel %vm281, %v992, 0.0
    %1002 = vadd.xlane.f32.xlu0 %v1001
    %v1003 = vpop.xlane.xlu0 %1002
    %v1004 = vsel %vm281, %v994, 0.0
    %1005 = vadd.xlane.f32.xlu0 %v1004
    %v1006 = vpop.xlane.xlu0 %1005
    %v1007 = vrcp.pop %v997
    %v1008 = vmul.f32 %v997, %v1007
    %v1009 = vsub.f32 1.0, %v1008
    %v1010 = vmul.f32 %v1007, %v1009
    %v1011 = vadd.f32 %v1007, %v1010
    %vm1012 = vweird.f32 %v997
    %vm1013 = vweird.f32 %v1007
    %vm1014 = vmor %vm1012, %vm1013
    %v1015 = vsel %vm1014, %v1007, %v1011
    %v1016 = vand.u32 2147483647, %v997
    %vm1017 = vcmp.eq.f32.partialorder %v1016, 8.507059e+37
    %v1018 = vand.u32 %v997, 2147483648
    %v1019 = vor.u32 1.1754944e-38, %v1018
    %v1020 = vsel %vm1017, %v1019, %v1015
    %v1021 = vmul.f32 %v988, %v1020
    %v1022 = vrcp.pop %v1000
    %v1023 = vmul.f32 %v1000, %v1022
    %v1024 = vsub.f32 1.0, %v1023
    %v1025 = vmul.f32 %v1022, %v1024
    %v1026 = vadd.f32 %v1022, %v1025
    %vm1027 = vweird.f32 %v1000
    %vm1028 = vweird.f32 %v1022
    %vm1029 = vmor %vm1027, %vm1028
    %v1030 = vsel %vm1029, %v1022, %v1026
    %v1031 = vand.u32 2147483647, %v1000
    %vm1032 = vcmp.eq.f32.partialorder %v1031, 8.507059e+37
    %v1033 = vand.u32 %v1000, 2147483648
    %v1034 = vor.u32 1.1754944e-38, %v1033
    %v1035 = vsel %vm1032, %v1034, %v1030
    %v1036 = vmul.f32 %v990, %v1035
    %v1037 = vrcp.pop %v1003
    %v1038 = vmul.f32 %v1003, %v1037
    %v1039 = vsub.f32 1.0, %v1038
    %v1040 = vmul.f32 %v1037, %v1039
    %v1041 = vadd.f32 %v1037, %v1040
    %vm1042 = vweird.f32 %v1003
    %vm1043 = vweird.f32 %v1037
    %vm1044 = vmor %vm1042, %vm1043
    %v1045 = vsel %vm1044, %v1037, %v1041
    %v1046 = vand.u32 2147483647, %v1003
    %vm1047 = vcmp.eq.f32.partialorder %v1046, 8.507059e+37
    %v1048 = vand.u32 %v1003, 2147483648
    %v1049 = vor.u32 1.1754944e-38, %v1048
    %v1050 = vsel %vm1047, %v1049, %v1045
    %v1051 = vmul.f32 %v992, %v1050
    %v1052 = vrcp.pop %v1006
    %v1053 = vmul.f32 %v1006, %v1052
    %v1054 = vsub.f32 1.0, %v1053
    %v1055 = vmul.f32 %v1052, %v1054
    %v1056 = vadd.f32 %v1052, %v1055
    %vm1057 = vweird.f32 %v1006
    %vm1058 = vweird.f32 %v1052
    %vm1059 = vmor %vm1057, %vm1058
    %v1060 = vsel %vm1059, %v1052, %v1056
    %v1061 = vand.u32 2147483647, %v1006
    %vm1062 = vcmp.eq.f32.partialorder %v1061, 8.507059e+37
    %v1063 = vand.u32 %v1006, 2147483648
    %v1064 = vor.u32 1.1754944e-38, %v1063
    %v1065 = vsel %vm1062, %v1064, %v1060
    %v1066 = vmul.f32 %v994, %v1065
    %v1067 = vpack.c.bf16 %v1021, %v1021
    %v1068 = vpack.c.bf16 %v1036, %v1036
    %v1069 = vpack.c.bf16 %v1051, %v1051
    %v1070 = vpack.c.bf16 %v1066, %v1066
    %v1073 = vunpack.c.l.b16 %v1067
    %v1074 = vunpack.c.l.b16 %v1068
    %v1075 = vpack.c.b16 %v1074, %v1073
    %1076 = vrot.lane.b32.xlu0 %v229, 72
    %v1077 = vpop.permute.xlu0 %1076
    %v1080 = vsel %vm281, %v1075, 0
    %1082 = vmatpush.bf16.msra.mxu0 0
    %1083 = vmatpush.bf16.msra.mxu0 0
    %1084 = vmatpush.bf16.msra.mxu0 0
    %1085 = vmatpush.bf16.msra.mxu0 0
    %1086 = vmatpush.bf16.msra.mxu0 0
    %1087 = vmatpush.bf16.msra.mxu0 0
    %1088 = vmatpush.bf16.msra.mxu0 0
    %1089 = vmatpush.bf16.msra.mxu0 %v1077
    %1090 = vmatmul.bf16.gmra.mxu0 %v1080
    %v1091 = vpop.f32.mrf.mxu0
    %v1092 = vadd.f32 0.0, %v1091
    %v1093 = vpop.f32.mrf.mxu0
    %v1094 = vadd.f32 0.0, %v1093
    %1095 = vdwg.mxu0
    %v1098 = vunpack.c.l.b16 %v1069
    %v1099 = vunpack.c.l.b16 %v1070
    %v1100 = vpack.c.b16 %v1099, %v1098
    %1101 = vrot.lane.b32.xlu0 %v260, 72
    %v1102 = vpop.permute.xlu0 %1101
    %v1105 = vsel %vm281, %v1100, 0
    %1107 = vmatpush.bf16.msra.mxu0 0
    %1108 = vmatpush.bf16.msra.mxu0 0
    %1109 = vmatpush.bf16.msra.mxu0 0
    %1110 = vmatpush.bf16.msra.mxu0 0
    %1111 = vmatpush.bf16.msra.mxu0 0
    %1112 = vmatpush.bf16.msra.mxu0 0
    %1113 = vmatpush.bf16.msra.mxu0 0
    %1114 = vmatpush.bf16.msra.mxu0 %v1102
    %1115 = vmatmul.bf16.gmra.mxu0 %v1105
    %v1116 = vpop.f32.mrf.mxu0
    %v1117 = vadd.f32 0.0, %v1116
    %v1118 = vpop.f32.mrf.mxu0
    %v1119 = vadd.f32 0.0, %v1118
    %1120 = vdwg.mxu0
    %v1121 = vpack.c.bf16 %v1094, %v1092
    %v1122 = vpack.c.bf16 %v1119, %v1117
    %v1124 = vsel %vm230, %v1121, 0
    %v1127 = vsel %vm230, %v1122, 0
    %v1130 = vsel %vm640, %v118, 0
    %1132 = vmatpush.bf16.msra.mxu0 0
    %1133 = vmatpush.bf16.msra.mxu0 0
    %1134 = vmatpush.bf16.msra.mxu0 0
    %1135 = vmatpush.bf16.msra.mxu0 0
    %1136 = vmatpush.bf16.msra.mxu0 0
    %1137 = vmatpush.bf16.msra.mxu0 0
    %1138 = vmatpush.bf16.msra.mxu0 0
    %1139 = vmatpush.bf16.msra.mxu0 %v1130
    %1140 = vmatmul.bf16.gmra.mxu0 %v1124
    %v1141 = vpop.f32.mrf.mxu0
    %v1142 = vadd.f32 0.0, %v1141
    %v1143 = vpop.f32.mrf.mxu0
    %v1144 = vadd.f32 0.0, %v1143
    %1145 = vmatmul.bf16.gmra.mxu0 %v1127
    %v1146 = vpop.f32.mrf.mxu0
    %v1147 = vadd.f32 0.0, %v1146
    %v1148 = vpop.f32.mrf.mxu0
    %v1149 = vadd.f32 0.0, %v1148
    %1150 = vdwg.mxu0
    %v1151 = vadd.f32 %v919, %v1142
    %v1152 = vadd.f32 %v920, %v1144
    %v1153 = vadd.f32 %v921, %v1147
    %v1154 = vadd.f32 %v922, %v1149
    %v1155 = vld [vmem:[%s6] sm:$0x7]
    %v1156 = vperm.slane %v1155, 0
    %v1157 = vadd.f32 %v1151, %v1156
    %v1158 = vadd.f32 %v1152, %v1156
    %v1159 = vadd.f32 %v1153, %v1156
    %v1160 = vadd.f32 %v1154, %v1156
    %v1161 = vadd.f32 %v1157, %v106
    %v1162 = vadd.f32 %v1158, %v107
    %v1163 = vadd.f32 %v1159, %v108
    %v1164 = vadd.f32 %v1160, %v109
    %v1165 = vsel %vm140, %v1161, 0.0
    %1166 = vadd.xlane.f32.xlu0 %v1165
    %v1167 = vpop.xlane.xlu0 %1166
    %v1168 = vsel %vm140, %v1162, 0.0
    %1169 = vadd.xlane.f32.xlu0 %v1168
    %v1170 = vpop.xlane.xlu0 %1169
    %v1171 = vsel %vm140, %v1163, 0.0
    %1172 = vadd.xlane.f32.xlu0 %v1171
    %v1173 = vpop.xlane.xlu0 %1172
    %v1174 = vsel %vm140, %v1164, 0.0
    %1175 = vadd.xlane.f32.xlu0 %v1174
    %v1176 = vpop.xlane.xlu0 %1175
    %v1177 = vrcp.pop 32.0
    %v1178 = vmul.f32 32.0, %v1177
    %v1179 = vsub.f32 1.0, %v1178
    %v1180 = vmul.f32 %v1177, %v1179
    %v1181 = vadd.f32 %v1177, %v1180
    %vm1182 = vweird.f32 %v1177
    %v1183 = vsel %vm1182, %v1177, %v1181
    %v1184 = vmul.f32 %v1167, %v1183
    %v1185 = vmul.f32 %v1170, %v1183
    %v1186 = vmul.f32 %v1173, %v1183
    %v1187 = vmul.f32 %v1176, %v1183
    %v1188 = vsub.f32 %v1161, %v1184
    %v1189 = vsub.f32 %v1162, %v1185
    %v1190 = vsub.f32 %v1163, %v1186
    %v1191 = vsub.f32 %v1164, %v1187
    %v1192 = vmul.f32 %v1188, %v1188
    %v1193 = vmul.f32 %v1189, %v1189
    %v1194 = vmul.f32 %v1190, %v1190
    %v1195 = vmul.f32 %v1191, %v1191
    %v1196 = vsel %vm140, %v1192, 0.0
    %1197 = vadd.xlane.f32.xlu0 %v1196
    %v1198 = vpop.xlane.xlu0 %1197
    %v1199 = vsel %vm140, %v1193, 0.0
    %1200 = vadd.xlane.f32.xlu0 %v1199
    %v1201 = vpop.xlane.xlu0 %1200
    %v1202 = vsel %vm140, %v1194, 0.0
    %1203 = vadd.xlane.f32.xlu0 %v1202
    %v1204 = vpop.xlane.xlu0 %1203
    %v1205 = vsel %vm140, %v1195, 0.0
    %1206 = vadd.xlane.f32.xlu0 %v1205
    %v1207 = vpop.xlane.xlu0 %1206
    %v1208 = vmul.f32 %v1198, %v1183
    %v1209 = vmul.f32 %v1201, %v1183
    %v1210 = vmul.f32 %v1204, %v1183
    %v1211 = vmul.f32 %v1207, %v1183
    %v1212 = vadd.f32 %v1208, 1e-05
    %v1213 = vadd.f32 %v1209, 1e-05
    %v1214 = vadd.f32 %v1210, 1e-05
    %v1215 = vadd.f32 %v1211, 1e-05
    %v1216 = vrsqrt.pop %v1212
    %v1217 = vmul.f32 %v1216, %v1212
    %v1218 = vmul.f32 %v1217, %v1216
    %v1219 = vmul.f32 0.5, %v1218
    %v1220 = vsub.f32 1.5, %v1219
    %v1221 = vmul.f32 %v1216, %v1220
    %vm1222 = vweird.f32 %v1212
    %vm1223 = vweird.f32 %v1216
    %vm1224 = vmor %vm1222, %vm1223
    %v1225 = vsel %vm1224, %v1216, %v1221
    %v1226 = vrsqrt.pop %v1213
    %v1227 = vmul.f32 %v1226, %v1213
    %v1228 = vmul.f32 %v1227, %v1226
    %v1229 = vmul.f32 0.5, %v1228
    %v1230 = vsub.f32 1.5, %v1229
    %v1231 = vmul.f32 %v1226, %v1230
    %vm1232 = vweird.f32 %v1213
    %vm1233 = vweird.f32 %v1226
    %vm1234 = vmor %vm1232, %vm1233
    %v1235 = vsel %vm1234, %v1226, %v1231
    %v1236 = vrsqrt.pop %v1214
    %v1237 = vmul.f32 %v1236, %v1214
    %v1238 = vmul.f32 %v1237, %v1236
    %v1239 = vmul.f32 0.5, %v1238
    %v1240 = vsub.f32 1.5, %v1239
    %v1241 = vmul.f32 %v1236, %v1240
    %vm1242 = vweird.f32 %v1214
    %vm1243 = vweird.f32 %v1236
    %vm1244 = vmor %vm1242, %vm1243
    %v1245 = vsel %vm1244, %v1236, %v1241
    %v1246 = vrsqrt.pop %v1215
    %v1247 = vmul.f32 %v1246, %v1215
    %v1248 = vmul.f32 %v1247, %v1246
    %v1249 = vmul.f32 0.5, %v1248
    %v1250 = vsub.f32 1.5, %v1249
    %v1251 = vmul.f32 %v1246, %v1250
    %vm1252 = vweird.f32 %v1215
    %vm1253 = vweird.f32 %v1246
    %vm1254 = vmor %vm1252, %vm1253
    %v1255 = vsel %vm1254, %v1246, %v1251
    %v1256 = vmul.f32 %v1188, %v1225
    %v1257 = vmul.f32 %v1189, %v1235
    %v1258 = vmul.f32 %v1190, %v1245
    %v1259 = vmul.f32 %v1191, %v1255
    %v1260 = vperm.slane %v1155, 1
    %v1261 = vmul.f32 %v1256, %v1260
    %v1262 = vmul.f32 %v1257, %v1260
    %v1263 = vmul.f32 %v1258, %v1260
    %v1264 = vmul.f32 %v1259, %v1260
    %v1265 = vperm.slane %v1155, 2
    %v1266 = vadd.f32 %v1261, %v1265
    %v1267 = vadd.f32 %v1262, %v1265
    %v1268 = vadd.f32 %v1263, %v1265
    %v1269 = vadd.f32 %v1264, %v1265
    %1270 = vst.msk [vmem:[#allocation11] sm:$0xff] %vm140, %v1266
    %1271 = vst.msk [vmem:[#allocation11 + $0x8] sm:$0xff] %vm140, %v1267
    %1272 = vst.msk [vmem:[#allocation11 + $0x10] sm:$0xff] %vm140, %v1268
    %1273 = vst.msk [vmem:[#allocation11 + $0x18] sm:$0xff] %vm140, %v1269
    // Predicated region
    $region50: #{tpu_custom_call.1} parent=1 // pred_check
      _
    $region51: #{tpu_custom_call.1} parent=1 // pred_check_branch
      %1275 = sbr.rel (0) target = $region53
    $region52: #{tpu_custom_call.1} parent=1 // pred_region
      %1277 = vsyncadd [#allocation4], 0
      %s1278 = sshll.u32 [#allocation11], 4
      %s1279 = int_to_ptr.vmem [resolvable:$true] %s1278
      %s1280 = sshll.u32 %s7, 4
      %s1281 = int_to_ptr.hbm [resolvable:$true] %s1280
      %1286 = dma.vmem_to_hbm [thread:$0]  %s1279, 512, %s1281, [#allocation4], 128, 128, 8
    $region53: #{tpu_custom_call.1} parent=1 // pred_fallthru
      _
    // Predicated region
    $region54: #{tpu_custom_call.1} parent=1 // pred_check
      _
    $region55: #{tpu_custom_call.1} parent=1 // pred_check_branch
      %1288 = sbr.rel (0) target = $region57
    $region56: #{tpu_custom_call.1} parent=1 // pred_region
      %1290 = dma.done [#allocation4], 512
    $region57: #{tpu_custom_call.1} parent=1 // pred_fallthru
      _
    %1291 = vsyncpa [#allocation3], 1
    %1292 = vsyncpa [#allocation6], 1
    %1293 = vsyncpa [#allocation9], 1
    %1294 = vsyncpa [#allocation4], 1

</llo_original>
